<compile_context>
chip_gen: v5e
topology: v5e:2x2
jax: 0.10.0
libtpu: 0.0.40
codegen_flags: <defaults>
</compile_context>

<pallas_src>
import functools

import numpy as np
import jax
import jax.numpy as jnp
from jax.experimental import pallas as pl
from jax.experimental.pallas import tpu as pltpu


# ----------------------------------------------------------------------------
# Pallas kernel: all four box-filter "convolutions" as MXU banded matmuls
# ----------------------------------------------------------------------------
def gf_kernel(xp_ref, colL_ref, colR_ref, colF_ref,
              rowF_ref, rowT_ref, rowB_ref, o_ref):
    # xp_ref block: (1, Hp, Wp) reflect-padded image for this batch element
    xp = xp_ref[0] + 0.01                                   # (Hp, Wp), f32

    # Column (lane-axis) window sums on the MXU: (Hp, Wp) @ (Wp, W)
    c_left = jnp.dot(xp, colL_ref[...], preferred_element_type=jnp.float32)
    c_right = jnp.dot(xp, colR_ref[...], preferred_element_type=jnp.float32)
    c_full = jnp.dot(xp, colF_ref[...], preferred_element_type=jnp.float32)

    # Row (sublane-axis) window sums on the MXU: (H, Hp) @ (Hp, W)
    gx1 = jnp.dot(rowF_ref[...], c_left, preferred_element_type=jnp.float32)
    gx2 = jnp.dot(rowF_ref[...], c_right, preferred_element_type=jnp.float32)
    gy1 = jnp.dot(rowT_ref[...], c_full, preferred_element_type=jnp.float32)
    gy2 = jnp.dot(rowB_ref[...], c_full, preferred_element_type=jnp.float32)

    gx = jnp.log(gx1 / gx2)
    gy = jnp.log(gy1 / gy2)
    o_ref[0] = jnp.sqrt(gx * gx + gy * gy)                  # (H, W)


# ----------------------------------------------------------------------------
# wrapper
# ----------------------------------------------------------------------------
def _band(n_out, n_in, lo, hi):
    # B[i, j] = 1.0 iff i + lo <= j <= i + hi       (shape (n_out, n_in))
    i = jnp.arange(n_out)[:, None]
    j = jnp.arange(n_in)[None, :]
    return ((j >= i + lo) & (j <= i + hi)).astype(jnp.float32)


@functools.partial(jax.jit, static_argnames=("k",))
def gf_forward(x, k=5):
    """GF.forward: x (N, 1, H, W) -> (N, 1, H, W)."""
    N, C, H, W = x.shape
    if C != 1:
        raise ValueError("GF expects a single input channel")
    kk = 2 * k
    Hp, Wp = H + kk, W + kk

    # single reflect pad (matches torch F.pad mode='reflect'); +0.01 done in-kernel
    xp = jnp.pad(x[:, 0].astype(jnp.float32), ((0, 0), (k, k), (k, k)),
                 mode="reflect")

    # 0/1 banded-ones matrices (constant for a given H, W, k)
    colL = _band(W, Wp, 0, k).T        # (Wp, W)  left-half columns  (weight_x1)
    colR = _band(W, Wp, k, kk).T       # (Wp, W)  right-half columns (weight_x2)
    colF = _band(W, Wp, 0, kk).T       # (Wp, W)  full columns
    rowF = _band(H, Hp, 0, kk)         # (H, Hp)  full rows
    rowT = _band(H, Hp, 0, k)          # (H, Hp)  top-half rows      (weight_y1)
    rowB = _band(H, Hp, k, kk)         # (H, Hp)  bottom-half rows   (weight_y2)

    def full_spec(a):
        return pl.BlockSpec(a.shape, lambda n: (0,) * a.ndim)

    out = pl.pallas_call(
        gf_kernel,
        out_shape=jax.ShapeDtypeStruct((N, H, W), jnp.float32),
        grid=(N,),
        in_specs=[pl.BlockSpec((1, Hp, Wp), lambda n: (n, 0, 0)),
                  full_spec(colL), full_spec(colR), full_spec(colF),
                  full_spec(rowF), full_spec(rowT), full_spec(rowB)],
        out_specs=pl.BlockSpec((1, H, W), lambda n: (n, 0, 0)),
        compiler_params=pltpu.CompilerParams(
            dimension_semantics=("parallel",)),
    )(xp, colL, colR, colF, rowF, rowT, rowB)

    return out[:, None]                                     # (N, 1, H, W)


# ----------------------------------------------------------------------------
# pure-numpy reference (straight port of the PyTorch module)
# ----------------------------------------------------------------------------
def gf_reference_np(x, k):
    N, _, H, W = x.shape
    K = 2 * k + 1
    xp = np.pad(x[:, 0].astype(np.float64), ((0, 0), (k, k), (k, k)),
                mode="reflect") + 0.01
    V = np.zeros((N, H, xp.shape[2]), np.float64)
    for r in range(K):
        V += xp[:, r:r + H, :]
    Hs = np.zeros((N, xp.shape[1], W), np.float64)
    for c in range(K):
        Hs += xp[:, :, c:c + W]
    gx1 = np.zeros((N, H, W)); gx2 = np.zeros((N, H, W))
    gy1 = np.zeros((N, H, W)); gy2 = np.zeros((N, H, W))
    for c in range(0, k + 1):
        gx1 += V[:, :, c:c + W]
    for c in range(k, K):
        gx2 += V[:, :, c:c + W]
    for r in range(0, k + 1):
        gy1 += Hs[:, r:r + H, :]
    for r in range(k, K):
        gy2 += Hs[:, r:r + H, :]
    gx = np.log(gx1 / gx2)
    gy = np.log(gy1 / gy2)
    return np.sqrt(gx * gx + gy * gy)[:, None].astype(np.float32)


# ----------------------------------------------------------------------------
if __name__ == "__main__":
    key = jax.random.PRNGKey(0)
    N, C, IMG, K = 2, 1, 128, 5            # kensize=5 is the module default
    x = jax.random.uniform(key, (N, C, IMG, IMG), dtype=jnp.float32)

    out = gf_forward(x, k=K)
    out = jax.block_until_ready(out)
    assert out.shape == (N, C, IMG, IMG)

    ref = gf_reference_np(np.asarray(x), K)
    np.testing.assert_allclose(np.asarray(out), ref, rtol=5e-2, atol=5e-2)

    print("KERNEL_OK")
</pallas_src>

<mosaic_0001>
module attributes {stable_mosaic.version = 11 : i64} {
  func.func @gf_kernel(%arg0: i32, %arg1: memref<1x138x138xf32, #tpu.memory_space<vmem>>, %arg2: memref<138x128xf32, #tpu.memory_space<vmem>>, %arg3: memref<138x128xf32, #tpu.memory_space<vmem>>, %arg4: memref<138x128xf32, #tpu.memory_space<vmem>>, %arg5: memref<128x138xf32, #tpu.memory_space<vmem>>, %arg6: memref<128x138xf32, #tpu.memory_space<vmem>>, %arg7: memref<128x138xf32, #tpu.memory_space<vmem>>, %arg8: memref<1x128x128xf32, #tpu.memory_space<vmem>>) attributes {dimension_semantics = [#tpu.dimension_semantics<parallel>], iteration_bounds = array<i64: 2>, scalar_prefetch = 0 : i64, scratch_operands = 0 : i64, tpu.core_type = #tpu.core_type<tc>, window_params = [{transform_indices = @transform_0, window_bounds = array<i64: 1, 138, 138>}, {pipeline_mode = #tpu.pipeline_mode<synchronous>, transform_indices = @transform_1, window_bounds = array<i64: 138, 128>}, {pipeline_mode = #tpu.pipeline_mode<synchronous>, transform_indices = @transform_2, window_bounds = array<i64: 138, 128>}, {pipeline_mode = #tpu.pipeline_mode<synchronous>, transform_indices = @transform_3, window_bounds = array<i64: 138, 128>}, {pipeline_mode = #tpu.pipeline_mode<synchronous>, transform_indices = @transform_4, window_bounds = array<i64: 128, 138>}, {pipeline_mode = #tpu.pipeline_mode<synchronous>, transform_indices = @transform_5, window_bounds = array<i64: 128, 138>}, {pipeline_mode = #tpu.pipeline_mode<synchronous>, transform_indices = @transform_6, window_bounds = array<i64: 128, 138>}, {transform_indices = @transform_7, window_bounds = array<i64: 1, 128, 128>}]} {
    %c0 = arith.constant 0 : index
    %c0_0 = arith.constant 0 : index
    %c0_1 = arith.constant 0 : index
    %0 = vector.load %arg1[%c0, %c0_0, %c0_1] : memref<1x138x138xf32, #tpu.memory_space<vmem>>, vector<1x138x138xf32>
    %1 = vector.shape_cast %0 : vector<1x138x138xf32> to vector<138x138xf32>
    %cst = arith.constant 0.00999999977 : f32
    %2 = vector.broadcast %cst : f32 to vector<138x138xf32>
    %3 = arith.addf %1, %2 : vector<138x138xf32>
    %c0_2 = arith.constant 0 : index
    %c0_3 = arith.constant 0 : index
    %4 = vector.load %arg2[%c0_2, %c0_3] : memref<138x128xf32, #tpu.memory_space<vmem>>, vector<138x128xf32>
    %cst_4 = arith.constant dense<0.000000e+00> : vector<138x128xf32>
    %5 = tpu.matmul %3, %4, %cst_4 {dimension_numbers = #tpu.dot_dimension_numbers<[1], [0], [0], [1], [0, 0, 1, 1], [], []>} : vector<138x138xf32>, vector<138x128xf32>, vector<138x128xf32> -> vector<138x128xf32>
    %c0_5 = arith.constant 0 : index
    %c0_6 = arith.constant 0 : index
    %6 = vector.load %arg3[%c0_5, %c0_6] : memref<138x128xf32, #tpu.memory_space<vmem>>, vector<138x128xf32>
    %cst_7 = arith.constant dense<0.000000e+00> : vector<138x128xf32>
    %7 = tpu.matmul %3, %6, %cst_7 {dimension_numbers = #tpu.dot_dimension_numbers<[1], [0], [0], [1], [0, 0, 1, 1], [], []>} : vector<138x138xf32>, vector<138x128xf32>, vector<138x128xf32> -> vector<138x128xf32>
    %c0_8 = arith.constant 0 : index
    %c0_9 = arith.constant 0 : index
    %8 = vector.load %arg4[%c0_8, %c0_9] : memref<138x128xf32, #tpu.memory_space<vmem>>, vector<138x128xf32>
    %cst_10 = arith.constant dense<0.000000e+00> : vector<138x128xf32>
    %9 = tpu.matmul %3, %8, %cst_10 {dimension_numbers = #tpu.dot_dimension_numbers<[1], [0], [0], [1], [0, 0, 1, 1], [], []>} : vector<138x138xf32>, vector<138x128xf32>, vector<138x128xf32> -> vector<138x128xf32>
    %c0_11 = arith.constant 0 : index
    %c0_12 = arith.constant 0 : index
    %10 = vector.load %arg5[%c0_11, %c0_12] : memref<128x138xf32, #tpu.memory_space<vmem>>, vector<128x138xf32>
    %cst_13 = arith.constant dense<0.000000e+00> : vector<128x128xf32>
    %11 = tpu.matmul %10, %5, %cst_13 {dimension_numbers = #tpu.dot_dimension_numbers<[1], [0], [0], [1], [0, 0, 1, 1], [], []>} : vector<128x138xf32>, vector<138x128xf32>, vector<128x128xf32> -> vector<128x128xf32>
    %c0_14 = arith.constant 0 : index
    %c0_15 = arith.constant 0 : index
    %12 = vector.load %arg5[%c0_14, %c0_15] : memref<128x138xf32, #tpu.memory_space<vmem>>, vector<128x138xf32>
    %cst_16 = arith.constant dense<0.000000e+00> : vector<128x128xf32>
    %13 = tpu.matmul %12, %7, %cst_16 {dimension_numbers = #tpu.dot_dimension_numbers<[1], [0], [0], [1], [0, 0, 1, 1], [], []>} : vector<128x138xf32>, vector<138x128xf32>, vector<128x128xf32> -> vector<128x128xf32>
    %c0_17 = arith.constant 0 : index
    %c0_18 = arith.constant 0 : index
    %14 = vector.load %arg6[%c0_17, %c0_18] : memref<128x138xf32, #tpu.memory_space<vmem>>, vector<128x138xf32>
    %cst_19 = arith.constant dense<0.000000e+00> : vector<128x128xf32>
    %15 = tpu.matmul %14, %9, %cst_19 {dimension_numbers = #tpu.dot_dimension_numbers<[1], [0], [0], [1], [0, 0, 1, 1], [], []>} : vector<128x138xf32>, vector<138x128xf32>, vector<128x128xf32> -> vector<128x128xf32>
    %c0_20 = arith.constant 0 : index
    %c0_21 = arith.constant 0 : index
    %16 = vector.load %arg7[%c0_20, %c0_21] : memref<128x138xf32, #tpu.memory_space<vmem>>, vector<128x138xf32>
    %cst_22 = arith.constant dense<0.000000e+00> : vector<128x128xf32>
    %17 = tpu.matmul %16, %9, %cst_22 {dimension_numbers = #tpu.dot_dimension_numbers<[1], [0], [0], [1], [0, 0, 1, 1], [], []>} : vector<128x138xf32>, vector<138x128xf32>, vector<128x128xf32> -> vector<128x128xf32>
    %18 = arith.divf %11, %13 : vector<128x128xf32>
    %19 = math.log %18 : vector<128x128xf32>
    %20 = arith.divf %15, %17 : vector<128x128xf32>
    %21 = math.log %20 : vector<128x128xf32>
    %22 = arith.mulf %19, %19 : vector<128x128xf32>
    %23 = arith.mulf %21, %21 : vector<128x128xf32>
    %24 = arith.addf %22, %23 : vector<128x128xf32>
    %25 = math.sqrt %24 : vector<128x128xf32>
    %c0_23 = arith.constant 0 : index
    %c0_24 = arith.constant 0 : index
    %c0_25 = arith.constant 0 : index
    %26 = vector.load %arg8[%c0_23, %c0_24, %c0_25] : memref<1x128x128xf32, #tpu.memory_space<vmem>>, vector<1x128x128xf32>
    %27 = vector.shape_cast %26 : vector<1x128x128xf32> to vector<128x128xf32>
    %28 = vector.shape_cast %25 : vector<128x128xf32> to vector<1x128x128xf32>
    tpu.vector_store %arg8[%c0_23, %c0_24, %c0_25], %28 {strides = array<i32>} : memref<1x128x128xf32, #tpu.memory_space<vmem>>, vector<1x128x128xf32>,
    return
  }
  func.func @transform_0(%arg0: i32) -> (i32, i32, i32) {
    %c0_i32 = arith.constant 0 : i32
    %c0_i32_0 = arith.constant 0 : i32
    %c0_i32_1 = arith.constant 0 : i32
    return %arg0, %c0_i32, %c0_i32_0 : i32, i32, i32
  }
  func.func @transform_1(%arg0: i32) -> (i32, i32) {
    %c0_i32 = arith.constant 0 : i32
    %c0_i32_0 = arith.constant 0 : i32
    %c0_i32_1 = arith.constant 0 : i32
    return %c0_i32, %c0_i32_0 : i32, i32
  }
  func.func @transform_2(%arg0: i32) -> (i32, i32) {
    %c0_i32 = arith.constant 0 : i32
    %c0_i32_0 = arith.constant 0 : i32
    %c0_i32_1 = arith.constant 0 : i32
    return %c0_i32, %c0_i32_0 : i32, i32
  }
  func.func @transform_3(%arg0: i32) -> (i32, i32) {
    %c0_i32 = arith.constant 0 : i32
    %c0_i32_0 = arith.constant 0 : i32
    %c0_i32_1 = arith.constant 0 : i32
    return %c0_i32, %c0_i32_0 : i32, i32
  }
  func.func @transform_4(%arg0: i32) -> (i32, i32) {
    %c0_i32 = arith.constant 0 : i32
    %c0_i32_0 = arith.constant 0 : i32
    %c0_i32_1 = arith.constant 0 : i32
    return %c0_i32, %c0_i32_0 : i32, i32
  }
  func.func @transform_5(%arg0: i32) -> (i32, i32) {
    %c0_i32 = arith.constant 0 : i32
    %c0_i32_0 = arith.constant 0 : i32
    %c0_i32_1 = arith.constant 0 : i32
    return %c0_i32, %c0_i32_0 : i32, i32
  }
  func.func @transform_6(%arg0: i32) -> (i32, i32) {
    %c0_i32 = arith.constant 0 : i32
    %c0_i32_0 = arith.constant 0 : i32
    %c0_i32_1 = arith.constant 0 : i32
    return %c0_i32, %c0_i32_0 : i32, i32
  }
  func.func @transform_7(%arg0: i32) -> (i32, i32, i32) {
    %c0_i32 = arith.constant 0 : i32
    %c0_i32_0 = arith.constant 0 : i32
    %c0_i32_1 = arith.constant 0 : i32
    return %arg0, %c0_i32, %c0_i32_0 : i32, i32, i32
  }
}

</mosaic_0001>

<llo_original>
// kernel: gf_forward.1
$region0: #{gf_forward.1}
  #allocation0 [shape = 'u32[]', space=smem, size = 0x4, offset = 0x4, fixed_abs, tag = 'smem constant byte address 0x4 - core index']
  #allocation1 [shape = 'u32[72,128]{1,0:T(1,128)}', space=vmem, size = 0x9000, scoped, tag = 'internal scratch']
  %s0 = inlined_call_operand.vmem [shape: f32[2,138,138], index: 0, kind: input, shape index: {}]
  %s1 = inlined_call_operand.vmem [shape: f32[138,128], index: 1, kind: input, shape index: {}]
  %s2 = inlined_call_operand.vmem [shape: f32[138,128], index: 2, kind: input, shape index: {}]
  %s3 = inlined_call_operand.vmem [shape: f32[138,128], index: 3, kind: input, shape index: {}]
  %s4 = inlined_call_operand.vmem [shape: f32[128,138], index: 4, kind: input, shape index: {}]
  %s5 = inlined_call_operand.vmem [shape: f32[128,138], index: 5, kind: input, shape index: {}]
  %s6 = inlined_call_operand.vmem [shape: f32[128,138], index: 6, kind: input, shape index: {}]
  %s7 = inlined_call_operand.hbm [shape: f32[2,128,128], index: 7, kind: output, shape index: {}]
  %s8 = sld [smem:[#allocation0]]
  $region61: #{gf_forward.1} parent=0
    _
  %s10 = ssub.s32 1, %s8
  %s11 = scalar_select 0, %s10, %s8
  $region1: #{gf_forward.1} parent=0
    #allocation2 [shape = 'u8[131072]{0}', space=vmem, size = 0x20000, scoped, tag = 'output window, operand 0']
    #allocation3 [shape = 's32[2]{0}', space=sflag, size = 0x8, scoped, tag = 'scoped memory for gf_forward.1']
    %12 = vsyncpa [#allocation3], 0
    %s13 = scalar_lea.sflag [#allocation3], 1
    %14 = vsyncpa %s13, 0
    loop: start=0, step=1, limit=4
    $region2: #{gf_forward.1} parent=1 // loop_pre_header
      _
    $region3: #{gf_forward.1} parent=1 // loop_header
      %s16 = sphi 0, %s20
      %p17 = scmp.ge.s32.totalorder %s16, 4
      %s26 = sphi 0, %s28
      %s29 = sphi 0, %s26
      %s30 = sphi 0, %s29
      %s46 = sphi 0, %s30
      %s50 = sphi 0, %s50
      %s52 = sphi 0, %s50
      %s53 = sphi 0, %s52
      %s67 = sphi 0, %s53
      %s71 = sphi 0, %s71
      %s73 = sphi 0, %s71
      %s74 = sphi 0, %s73
      %s88 = sphi 0, %s74
      %s92 = sphi 0, %s92
      %s94 = sphi 0, %s92
      %s95 = sphi 0, %s94
      %s109 = sphi 0, %s95
      %s113 = sphi 0, %s113
      %s115 = sphi 0, %s113
      %s116 = sphi 0, %s115
      %s130 = sphi 0, %s116
      %s134 = sphi 0, %s134
      %s136 = sphi 0, %s134
      %s137 = sphi 0, %s136
      %s151 = sphi 0, %s137
      %s155 = sphi 0, %s155
      %s157 = sphi 0, %s155
      %s158 = sphi 0, %s157
      %s172 = sphi 0, %s158
      %s178 = sphi 0, %s180
      %s181 = sphi 0, %s178
      %s182 = sphi 0, %s181
      %s198 = sphi 0, %s182
    $region4: #{gf_forward.1} parent=1 // loop_header_branch
      %19 = sbr.rel (%p17) target = $region8
    $region5: #{gf_forward.1} parent=1 // loop_body
      %s21 = ssub.s32 %s16, 1
      %s22 = ssub.s32 %s16, 2
      %s23 = sadd.s32 %s16, 1
      %s24 = ssub.s32 %s16, %s23
      %p25 = scmp.eq.s32.totalorder %s24, 0
      %s27 = sadd.s32 %s26, 1
      %s28 = scalar_select %p25, %s26, %s27
      %p31 = pneg %p25
      %p32 = scmp.eq.s32.totalorder %s16, 1
      %p33 = por %p31, %p32
      %p34 = scmp.ne.s32.totalorder %s26, %s29
      %p35 = scmp.eq.s32.totalorder %s16, 0
      %p36 = por %p34, %p35
      %p37 = scmp.ne.s32.totalorder %s26, %s29
      %p38 = scmp.eq.s32.totalorder %s21, 1
      %p39 = por %p37, %p38
      %p40 = scmp.ne.s32.totalorder %s29, %s30
      %p41 = scmp.eq.s32.totalorder %s21, 0
      %p42 = por %p40, %p41
      %p43 = scmp.ne.s32.totalorder %s29, %s30
      %p44 = scmp.eq.s32.totalorder %s22, 1
      %p45 = por %p43, %p44
      %p47 = scmp.ne.s32.totalorder %s30, %s46
      %p48 = scmp.eq.s32.totalorder %s22, 0
      %p49 = por %p47, %p48
      %s51 = sadd.s32 %s50, 1
      %p54 = scmp.eq.s32.totalorder %s16, 1
      %p55 = scmp.ne.s32.totalorder %s50, %s52
      %p56 = scmp.eq.s32.totalorder %s16, 0
      %p57 = por %p55, %p56
      %p58 = scmp.ne.s32.totalorder %s50, %s52
      %p59 = scmp.eq.s32.totalorder %s21, 1
      %p60 = por %p58, %p59
      %p61 = scmp.ne.s32.totalorder %s52, %s53
      %p62 = scmp.eq.s32.totalorder %s21, 0
      %p63 = por %p61, %p62
      %p64 = scmp.ne.s32.totalorder %s52, %s53
      %p65 = scmp.eq.s32.totalorder %s22, 1
      %p66 = por %p64, %p65
      %p68 = scmp.ne.s32.totalorder %s53, %s67
      %p69 = scmp.eq.s32.totalorder %s22, 0
      %p70 = por %p68, %p69
      %s72 = sadd.s32 %s71, 1
      %p75 = scmp.eq.s32.totalorder %s16, 1
      %p76 = scmp.ne.s32.totalorder %s71, %s73
      %p77 = scmp.eq.s32.totalorder %s16, 0
      %p78 = por %p76, %p77
      %p79 = scmp.ne.s32.totalorder %s71, %s73
      %p80 = scmp.eq.s32.totalorder %s21, 1
      %p81 = por %p79, %p80
      %p82 = scmp.ne.s32.totalorder %s73, %s74
      %p83 = scmp.eq.s32.totalorder %s21, 0
      %p84 = por %p82, %p83
      %p85 = scmp.ne.s32.totalorder %s73, %s74
      %p86 = scmp.eq.s32.totalorder %s22, 1
      %p87 = por %p85, %p86
      %p89 = scmp.ne.s32.totalorder %s74, %s88
      %p90 = scmp.eq.s32.totalorder %s22, 0
      %p91 = por %p89, %p90
      %s93 = sadd.s32 %s92, 1
      %p96 = scmp.eq.s32.totalorder %s16, 1
      %p97 = scmp.ne.s32.totalorder %s92, %s94
      %p98 = scmp.eq.s32.totalorder %s16, 0
      %p99 = por %p97, %p98
      %p100 = scmp.ne.s32.totalorder %s92, %s94
      %p101 = scmp.eq.s32.totalorder %s21, 1
      %p102 = por %p100, %p101
      %p103 = scmp.ne.s32.totalorder %s94, %s95
      %p104 = scmp.eq.s32.totalorder %s21, 0
      %p105 = por %p103, %p104
      %p106 = scmp.ne.s32.totalorder %s94, %s95
      %p107 = scmp.eq.s32.totalorder %s22, 1
      %p108 = por %p106, %p107
      %p110 = scmp.ne.s32.totalorder %s95, %s109
      %p111 = scmp.eq.s32.totalorder %s22, 0
      %p112 = por %p110, %p111
      %s114 = sadd.s32 %s113, 1
      %p117 = scmp.eq.s32.totalorder %s16, 1
      %p118 = scmp.ne.s32.totalorder %s113, %s115
      %p119 = scmp.eq.s32.totalorder %s16, 0
      %p120 = por %p118, %p119
      %p121 = scmp.ne.s32.totalorder %s113, %s115
      %p122 = scmp.eq.s32.totalorder %s21, 1
      %p123 = por %p121, %p122
      %p124 = scmp.ne.s32.totalorder %s115, %s116
      %p125 = scmp.eq.s32.totalorder %s21, 0
      %p126 = por %p124, %p125
      %p127 = scmp.ne.s32.totalorder %s115, %s116
      %p128 = scmp.eq.s32.totalorder %s22, 1
      %p129 = por %p127, %p128
      %p131 = scmp.ne.s32.totalorder %s116, %s130
      %p132 = scmp.eq.s32.totalorder %s22, 0
      %p133 = por %p131, %p132
      %s135 = sadd.s32 %s134, 1
      %p138 = scmp.eq.s32.totalorder %s16, 1
      %p139 = scmp.ne.s32.totalorder %s134, %s136
      %p140 = scmp.eq.s32.totalorder %s16, 0
      %p141 = por %p139, %p140
      %p142 = scmp.ne.s32.totalorder %s134, %s136
      %p143 = scmp.eq.s32.totalorder %s21, 1
      %p144 = por %p142, %p143
      %p145 = scmp.ne.s32.totalorder %s136, %s137
      %p146 = scmp.eq.s32.totalorder %s21, 0
      %p147 = por %p145, %p146
      %p148 = scmp.ne.s32.totalorder %s136, %s137
      %p149 = scmp.eq.s32.totalorder %s22, 1
      %p150 = por %p148, %p149
      %p152 = scmp.ne.s32.totalorder %s137, %s151
      %p153 = scmp.eq.s32.totalorder %s22, 0
      %p154 = por %p152, %p153
      %s156 = sadd.s32 %s155, 1
      %p159 = scmp.eq.s32.totalorder %s16, 1
      %p160 = scmp.ne.s32.totalorder %s155, %s157
      %p161 = scmp.eq.s32.totalorder %s16, 0
      %p162 = por %p160, %p161
      %p163 = scmp.ne.s32.totalorder %s155, %s157
      %p164 = scmp.eq.s32.totalorder %s21, 1
      %p165 = por %p163, %p164
      %p166 = scmp.ne.s32.totalorder %s157, %s158
      %p167 = scmp.eq.s32.totalorder %s21, 0
      %p168 = por %p166, %p167
      %p169 = scmp.ne.s32.totalorder %s157, %s158
      %p170 = scmp.eq.s32.totalorder %s22, 1
      %p171 = por %p169, %p170
      %p173 = scmp.ne.s32.totalorder %s158, %s172
      %p174 = scmp.eq.s32.totalorder %s22, 0
      %p175 = por %p173, %p174
      %s176 = ssub.s32 %s16, %s23
      %p177 = scmp.eq.s32.totalorder %s176, 0
      %s179 = sadd.s32 %s178, 1
      %s180 = scalar_select %p177, %s178, %s179
      %p183 = pneg %p177
      %p184 = scmp.eq.s32.totalorder %s16, 1
      %p185 = por %p183, %p184
      %p186 = scmp.ne.s32.totalorder %s178, %s181
      %p187 = scmp.eq.s32.totalorder %s16, 0
      %p188 = por %p186, %p187
      %p189 = scmp.ne.s32.totalorder %s178, %s181
      %p190 = scmp.eq.s32.totalorder %s21, 1
      %p191 = por %p189, %p190
      %p192 = scmp.ne.s32.totalorder %s181, %s182
      %p193 = scmp.eq.s32.totalorder %s21, 0
      %p194 = por %p192, %p193
      %p195 = scmp.ne.s32.totalorder %s181, %s182
      %p196 = scmp.eq.s32.totalorder %s22, 1
      %p197 = por %p195, %p196
      %p199 = scmp.ne.s32.totalorder %s182, %s198
      %p200 = scmp.eq.s32.totalorder %s22, 0
      %p201 = por %p199, %p200
      %p202 = scmp.le.s32.totalorder 1, %s16
      %p203 = scmp.lt.s32.totalorder %s16, 3
      %p204 = pnand %p202, %p203
      %p205 = pneg %p204
      // Predicated region
      $region9: #{gf_forward.1} parent=5 // pred_check
        _
      $region10: #{gf_forward.1} parent=5 // pred_check_branch
        %207 = sbr.rel (%p204) target = $region12
      $region11: #{gf_forward.1} parent=5 // pred_region
        %s208 = ssub.s32 %s16, 1
        // Predicated region
        $region13: #{gf_forward.1} parent=11 // pred_check
          %p209 = pneg %p63
        $region14: #{gf_forward.1} parent=11 // pred_check_branch
          %211 = sbr.rel (%p209) target = $region16
        $region15: #{gf_forward.1} parent=11 // pred_region
          _
        $region16: #{gf_forward.1} parent=11 // pred_fallthru
          _
        // Predicated region
        $region17: #{gf_forward.1} parent=11 // pred_check
          %p212 = pneg %p84
        $region18: #{gf_forward.1} parent=11 // pred_check_branch
          %214 = sbr.rel (%p212) target = $region20
        $region19: #{gf_forward.1} parent=11 // pred_region
          _
        $region20: #{gf_forward.1} parent=11 // pred_fallthru
          _
        // Predicated region
        $region21: #{gf_forward.1} parent=11 // pred_check
          %p215 = pneg %p105
        $region22: #{gf_forward.1} parent=11 // pred_check_branch
          %217 = sbr.rel (%p215) target = $region24
        $region23: #{gf_forward.1} parent=11 // pred_region
          _
        $region24: #{gf_forward.1} parent=11 // pred_fallthru
          _
        // Predicated region
        $region25: #{gf_forward.1} parent=11 // pred_check
          %p218 = pneg %p126
        $region26: #{gf_forward.1} parent=11 // pred_check_branch
          %220 = sbr.rel (%p218) target = $region28
        $region27: #{gf_forward.1} parent=11 // pred_region
          _
        $region28: #{gf_forward.1} parent=11 // pred_fallthru
          _
        // Predicated region
        $region29: #{gf_forward.1} parent=11 // pred_check
          %p221 = pneg %p147
        $region30: #{gf_forward.1} parent=11 // pred_check_branch
          %223 = sbr.rel (%p221) target = $region32
        $region31: #{gf_forward.1} parent=11 // pred_region
          _
        $region32: #{gf_forward.1} parent=11 // pred_fallthru
          _
        // Predicated region
        $region33: #{gf_forward.1} parent=11 // pred_check
          %p224 = pneg %p168
        $region34: #{gf_forward.1} parent=11 // pred_check_branch
          %226 = sbr.rel (%p224) target = $region36
        $region35: #{gf_forward.1} parent=11 // pred_region
          _
        $region36: #{gf_forward.1} parent=11 // pred_fallthru
          _
      $region12: #{gf_forward.1} parent=5 // pred_fallthru
        _
      %p227 = scmp.lt.s32.totalorder %s16, 2
      // Predicated region
      $region37: #{gf_forward.1} parent=5 // pred_check
        %p228 = pneg %p227
      $region38: #{gf_forward.1} parent=5 // pred_check_branch
        %230 = sbr.rel (%p228) target = $region40
      $region39: #{gf_forward.1} parent=5 // pred_region
        // Predicated region
        $region41: #{gf_forward.1} parent=39 // pred_check
          %p231 = pneg %p36
        $region42: #{gf_forward.1} parent=39 // pred_check_branch
          %233 = sbr.rel (%p231) target = $region44
        $region43: #{gf_forward.1} parent=39 // pred_region
          %p234 = scmp.lt.s32.totalorder %s16, 1
          %s235 = scalar_select %p234, %s16, 1
          %s236 = smul.addr %s235, 36
          %s237 = smul.addr %s236, 8
          %s238 = scalar_lea.vmem %s0, %s237
        $region44: #{gf_forward.1} parent=39 // pred_fallthru
          _
      $region40: #{gf_forward.1} parent=5 // pred_fallthru
        _
      %p239 = scmp.le.s32.totalorder 1, %s16
      %p240 = scmp.lt.s32.totalorder %s16, 3
      %p241 = pnand %p239, %p240
      %p242 = pneg %p241
      // Predicated region
      $region45: #{gf_forward.1} parent=5 // pred_check
        _
      $region46: #{gf_forward.1} parent=5 // pred_check_branch
        %244 = sbr.rel (%p241) target = $region48
      $region47: #{gf_forward.1} parent=5 // pred_region
        %s245 = ssub.s32 %s16, 1
        %p246 = scmp.lt.s32.totalorder %s21, 1
        %s247 = scalar_select %p246, %s21, 1
        %s248 = smul.addr %s247, 36
        %s249 = smul.addr %s248, 8
        %s250 = scalar_lea.vmem %s0, %s249
        %p251 = pneg %p42
        %p252 = pneg %p39
        %p253 = pneg %p63
        %p254 = pneg %p60
        %p255 = pneg %p84
        %p256 = pneg %p81
        %p257 = pneg %p105
        %p258 = pneg %p102
        %p259 = pneg %p126
        %p260 = pneg %p123
        %p261 = pneg %p147
        %p262 = pneg %p144
        %p263 = pneg %p168
        %p264 = pneg %p165
        %p265 = pneg %p194
        %p266 = pneg %p191
        %s267 = sand.u32 %s181, 1
        %s268 = scalar_lea.sflag [#allocation3], %s267
        %s269 = sand.u32 %s181, 1
        %s270 = smul.addr %s269, 128
        %s271 = scalar_lea.vmem [#allocation2], %s270
        %p272 = scmp.lt.s32.totalorder %s21, 1
        %s273 = scalar_select %p272, %s21, 1
        %s274 = smul.addr %s273, 36
        %s275 = smul.addr %s274, 8
        %s276 = scalar_lea.vmem %s0, %s275
        %v277 = vld [vmem:[%s276] sm:$0xff]
        %v278 = vld [vmem:[%s276 + $0x8] sm:$0xff]
        %v279 = vld [vmem:[%s276 + $0x10] sm:$0xff]
        %v280 = vld [vmem:[%s276 + $0x18] sm:$0xff]
        %v281 = vld [vmem:[%s276 + $0x20] sm:$0xff]
        %v282 = vld [vmem:[%s276 + $0x28] sm:$0xff]
        %v283 = vld [vmem:[%s276 + $0x30] sm:$0xff]
        %v284 = vld [vmem:[%s276 + $0x38] sm:$0xff]
        %v285 = vld [vmem:[%s276 + $0x40] sm:$0xff]
        %v286 = vld [vmem:[%s276 + $0x48] sm:$0xff]
        %v287 = vld [vmem:[%s276 + $0x50] sm:$0xff]
        %v288 = vld [vmem:[%s276 + $0x58] sm:$0xff]
        %v289 = vld [vmem:[%s276 + $0x60] sm:$0xff]
        %v290 = vld [vmem:[%s276 + $0x68] sm:$0xff]
        %v291 = vld [vmem:[%s276 + $0x70] sm:$0xff]
        %v292 = vld [vmem:[%s276 + $0x78] sm:$0xff]
        %v293 = vld [vmem:[%s276 + $0x80] sm:$0xff]
        %v294 = vld [vmem:[%s276 + $0x88] sm:$0xff]
        %v295 = vld [vmem:[%s276 + $0x90] sm:$0xff]
        %v296 = vld [vmem:[%s276 + $0x98] sm:$0xff]
        %v297 = vld [vmem:[%s276 + $0xa0] sm:$0xff]
        %v298 = vld [vmem:[%s276 + $0xa8] sm:$0xff]
        %v299 = vld [vmem:[%s276 + $0xb0] sm:$0xff]
        %v300 = vld [vmem:[%s276 + $0xb8] sm:$0xff]
        %v301 = vld [vmem:[%s276 + $0xc0] sm:$0xff]
        %v302 = vld [vmem:[%s276 + $0xc8] sm:$0xff]
        %v303 = vld [vmem:[%s276 + $0xd0] sm:$0xff]
        %v304 = vld [vmem:[%s276 + $0xd8] sm:$0xff]
        %v305 = vld [vmem:[%s276 + $0xe0] sm:$0xff]
        %v306 = vld [vmem:[%s276 + $0xe8] sm:$0xff]
        %v307 = vld [vmem:[%s276 + $0xf0] sm:$0xff]
        %v308 = vld [vmem:[%s276 + $0xf8] sm:$0xff]
        %v309 = vld [vmem:[%s276 + $0x100] sm:$0xff]
        %v310 = vld [vmem:[%s276 + $0x108] sm:$0xff]
        %v311 = vld [vmem:[%s276 + $0x110] sm:$0x3]
        %v312 = vld [vmem:[%s276 + $0x118] sm:$0x3]
        %v313 = vadd.f32 %v277, 0.01
        %v314 = vadd.f32 %v278, 0.01
        %v315 = vadd.f32 %v279, 0.01
        %v316 = vadd.f32 %v280, 0.01
        %v317 = vadd.f32 %v281, 0.01
        %v318 = vadd.f32 %v282, 0.01
        %v319 = vadd.f32 %v283, 0.01
        %v320 = vadd.f32 %v284, 0.01
        %v321 = vadd.f32 %v285, 0.01
        %v322 = vadd.f32 %v286, 0.01
        %v323 = vadd.f32 %v287, 0.01
        %v324 = vadd.f32 %v288, 0.01
        %v325 = vadd.f32 %v289, 0.01
        %v326 = vadd.f32 %v290, 0.01
        %v327 = vadd.f32 %v291, 0.01
        %v328 = vadd.f32 %v292, 0.01
        %v329 = vadd.f32 %v293, 0.01
        %v330 = vadd.f32 %v294, 0.01
        %v331 = vadd.f32 %v295, 0.01
        %v332 = vadd.f32 %v296, 0.01
        %v333 = vadd.f32 %v297, 0.01
        %v334 = vadd.f32 %v298, 0.01
        %v335 = vadd.f32 %v299, 0.01
        %v336 = vadd.f32 %v300, 0.01
        %v337 = vadd.f32 %v301, 0.01
        %v338 = vadd.f32 %v302, 0.01
        %v339 = vadd.f32 %v303, 0.01
        %v340 = vadd.f32 %v304, 0.01
        %v341 = vadd.f32 %v305, 0.01
        %v342 = vadd.f32 %v306, 0.01
        %v343 = vadd.f32 %v307, 0.01
        %v344 = vadd.f32 %v308, 0.01
        %v345 = vadd.f32 %v309, 0.01
        %v346 = vadd.f32 %v310, 0.01
        %v347 = vadd.f32 %v311, 0.01
        %v348 = vadd.f32 %v312, 0.01
        %v349 = vld [vmem:[%s1] sm:$0xff]
        %v350 = vld [vmem:[%s1 + $0x8] sm:$0xff]
        %v351 = vld [vmem:[%s1 + $0x10] sm:$0xff]
        %v352 = vld [vmem:[%s1 + $0x18] sm:$0xff]
        %v353 = vld [vmem:[%s1 + $0x20] sm:$0xff]
        %v354 = vld [vmem:[%s1 + $0x28] sm:$0xff]
        %v355 = vld [vmem:[%s1 + $0x30] sm:$0xff]
        %v356 = vld [vmem:[%s1 + $0x38] sm:$0xff]
        %v357 = vld [vmem:[%s1 + $0x40] sm:$0xff]
        %v358 = vld [vmem:[%s1 + $0x48] sm:$0xff]
        %v359 = vld [vmem:[%s1 + $0x50] sm:$0xff]
        %v360 = vld [vmem:[%s1 + $0x58] sm:$0xff]
        %v361 = vld [vmem:[%s1 + $0x60] sm:$0xff]
        %v362 = vld [vmem:[%s1 + $0x68] sm:$0xff]
        %v363 = vld [vmem:[%s1 + $0x70] sm:$0xff]
        %v364 = vld [vmem:[%s1 + $0x78] sm:$0xff]
        %v365 = vld [vmem:[%s1 + $0x80] sm:$0xff]
        %v366 = vld [vmem:[%s1 + $0x88] sm:$0x3]
        %vm367 = vcmask 80896
        %v369 = vsel %vm367, %v314, 0
        %v372 = vsel %vm367, %v316, 0
        %v375 = vsel %vm367, %v318, 0
        %v378 = vsel %vm367, %v320, 0
        %v381 = vsel %vm367, %v322, 0
        %v384 = vsel %vm367, %v324, 0
        %v387 = vsel %vm367, %v326, 0
        %v390 = vsel %vm367, %v328, 0
        %v393 = vsel %vm367, %v330, 0
        %v396 = vsel %vm367, %v332, 0
        %v399 = vsel %vm367, %v334, 0
        %v402 = vsel %vm367, %v336, 0
        %v405 = vsel %vm367, %v338, 0
        %v408 = vsel %vm367, %v340, 0
        %v411 = vsel %vm367, %v342, 0
        %v414 = vsel %vm367, %v344, 0
        %v417 = vsel %vm367, %v346, 0
        %v420 = vsel %vm367, %v348, 0
        %vm422 = vcmask 1041408
        %v424 = vsel %vm422, %v366, 0
        %426 = vmatpush.msra.mxu0 %v364
        %427 = vmatpush.msra.mxu0 %v363
        %428 = vmatpush.msra.mxu0 %v362
        %429 = vmatpush.msra.mxu0 %v361
        %430 = vmatpush.msra.mxu0 %v360
        %431 = vmatpush.msra.mxu0 %v359
        %432 = vmatpush.msra.mxu0 %v358
        %433 = vmatpush.msra.mxu0 %v357
        %434 = vmatpush.msra.mxu0 %v356
        %435 = vmatpush.msra.mxu0 %v355
        %436 = vmatpush.msra.mxu0 %v354
        %437 = vmatpush.msra.mxu0 %v353
        %438 = vmatpush.msra.mxu0 %v352
        %439 = vmatpush.msra.mxu0 %v351
        %440 = vmatpush.msra.mxu0 %v350
        %441 = vmatpush.msra.mxu0 %v349
        %442 = vmatmul.f32.gmra.mxu0 %v313
        %v443 = vpop.f32.mrf.mxu0
        %v444 = vadd.f32 0.0, %v443
        %445 = vmatmul.f32.gmra.mxu0 %v315
        %v446 = vpop.f32.mrf.mxu0
        %v447 = vadd.f32 0.0, %v446
        %448 = vmatmul.f32.gmra.mxu0 %v317
        %v449 = vpop.f32.mrf.mxu0
        %v450 = vadd.f32 0.0, %v449
        %451 = vmatmul.f32.gmra.mxu0 %v319
        %v452 = vpop.f32.mrf.mxu0
        %v453 = vadd.f32 0.0, %v452
        %454 = vmatmul.f32.gmra.mxu0 %v321
        %v455 = vpop.f32.mrf.mxu0
        %v456 = vadd.f32 0.0, %v455
        %457 = vmatmul.f32.gmra.mxu0 %v323
        %v458 = vpop.f32.mrf.mxu0
        %v459 = vadd.f32 0.0, %v458
        %460 = vmatmul.f32.gmra.mxu0 %v325
        %v461 = vpop.f32.mrf.mxu0
        %v462 = vadd.f32 0.0, %v461
        %463 = vmatmul.f32.gmra.mxu0 %v327
        %v464 = vpop.f32.mrf.mxu0
        %v465 = vadd.f32 0.0, %v464
        %466 = vmatmul.f32.gmra.mxu0 %v329
        %v467 = vpop.f32.mrf.mxu0
        %v468 = vadd.f32 0.0, %v467
        %469 = vmatmul.f32.gmra.mxu0 %v331
        %v470 = vpop.f32.mrf.mxu0
        %v471 = vadd.f32 0.0, %v470
        %472 = vmatmul.f32.gmra.mxu0 %v333
        %v473 = vpop.f32.mrf.mxu0
        %v474 = vadd.f32 0.0, %v473
        %475 = vmatmul.f32.gmra.mxu0 %v335
        %v476 = vpop.f32.mrf.mxu0
        %v477 = vadd.f32 0.0, %v476
        %478 = vmatmul.f32.gmra.mxu0 %v337
        %v479 = vpop.f32.mrf.mxu0
        %v480 = vadd.f32 0.0, %v479
        %481 = vmatmul.f32.gmra.mxu0 %v339
        %v482 = vpop.f32.mrf.mxu0
        %v483 = vadd.f32 0.0, %v482
        %484 = vmatmul.f32.gmra.mxu0 %v341
        %v485 = vpop.f32.mrf.mxu0
        %v486 = vadd.f32 0.0, %v485
        %487 = vmatmul.f32.gmra.mxu0 %v343
        %v488 = vpop.f32.mrf.mxu0
        %v489 = vadd.f32 0.0, %v488
        %490 = vmatmul.f32.gmra.mxu0 %v345
        %v491 = vpop.f32.mrf.mxu0
        %v492 = vadd.f32 0.0, %v491
        %493 = vmatmul.f32.gmra.mxu0 %v347
        %v494 = vpop.f32.mrf.mxu0
        %v495 = vadd.f32 0.0, %v494
        %496 = vdwg.mxu0
        %497 = vmatpush.msra.mxu0 0.0
        %498 = vmatpush.msra.mxu0 0.0
        %499 = vmatpush.msra.mxu0 0.0
        %500 = vmatpush.msra.mxu0 0.0
        %501 = vmatpush.msra.mxu0 0.0
        %502 = vmatpush.msra.mxu0 0.0
        %503 = vmatpush.msra.mxu0 0.0
        %504 = vmatpush.msra.mxu0 0.0
        %505 = vmatpush.msra.mxu0 0.0
        %506 = vmatpush.msra.mxu0 0.0
        %507 = vmatpush.msra.mxu0 0.0
        %508 = vmatpush.msra.mxu0 0.0
        %509 = vmatpush.msra.mxu0 0.0
        %510 = vmatpush.msra.mxu0 0.0
        %511 = vmatpush.msra.mxu0 %v424
        %512 = vmatpush.msra.mxu0 %v365
        %513 = vmatmul.f32.gmra.mxu0 %v369
        %v514 = vpop.f32.mrf.mxu0
        %v515 = vadd.f32 %v444, %v514
        %516 = vmatmul.f32.gmra.mxu0 %v372
        %v517 = vpop.f32.mrf.mxu0
        %v518 = vadd.f32 %v447, %v517
        %519 = vmatmul.f32.gmra.mxu0 %v375
        %v520 = vpop.f32.mrf.mxu0
        %v521 = vadd.f32 %v450, %v520
        %522 = vmatmul.f32.gmra.mxu0 %v378
        %v523 = vpop.f32.mrf.mxu0
        %v524 = vadd.f32 %v453, %v523
        %525 = vmatmul.f32.gmra.mxu0 %v381
        %v526 = vpop.f32.mrf.mxu0
        %v527 = vadd.f32 %v456, %v526
        %528 = vmatmul.f32.gmra.mxu0 %v384
        %v529 = vpop.f32.mrf.mxu0
        %v530 = vadd.f32 %v459, %v529
        %531 = vmatmul.f32.gmra.mxu0 %v387
        %v532 = vpop.f32.mrf.mxu0
        %v533 = vadd.f32 %v462, %v532
        %534 = vmatmul.f32.gmra.mxu0 %v390
        %v535 = vpop.f32.mrf.mxu0
        %v536 = vadd.f32 %v465, %v535
        %537 = vmatmul.f32.gmra.mxu0 %v393
        %v538 = vpop.f32.mrf.mxu0
        %v539 = vadd.f32 %v468, %v538
        %540 = vmatmul.f32.gmra.mxu0 %v396
        %v541 = vpop.f32.mrf.mxu0
        %v542 = vadd.f32 %v471, %v541
        %543 = vmatmul.f32.gmra.mxu0 %v399
        %v544 = vpop.f32.mrf.mxu0
        %v545 = vadd.f32 %v474, %v544
        %546 = vmatmul.f32.gmra.mxu0 %v402
        %v547 = vpop.f32.mrf.mxu0
        %v548 = vadd.f32 %v477, %v547
        %549 = vmatmul.f32.gmra.mxu0 %v405
        %v550 = vpop.f32.mrf.mxu0
        %v551 = vadd.f32 %v480, %v550
        %552 = vmatmul.f32.gmra.mxu0 %v408
        %v553 = vpop.f32.mrf.mxu0
        %v554 = vadd.f32 %v483, %v553
        %555 = vmatmul.f32.gmra.mxu0 %v411
        %v556 = vpop.f32.mrf.mxu0
        %v557 = vadd.f32 %v486, %v556
        %558 = vmatmul.f32.gmra.mxu0 %v414
        %v559 = vpop.f32.mrf.mxu0
        %v560 = vadd.f32 %v489, %v559
        %561 = vmatmul.f32.gmra.mxu0 %v417
        %v562 = vpop.f32.mrf.mxu0
        %v563 = vadd.f32 %v492, %v562
        %564 = vmatmul.f32.gmra.mxu0 %v420
        %v565 = vpop.f32.mrf.mxu0
        %v566 = vadd.f32 %v495, %v565
        %567 = vdwg.mxu0
        %v568 = vld [vmem:[%s2] sm:$0xff]
        %v569 = vld [vmem:[%s2 + $0x8] sm:$0xff]
        %v570 = vld [vmem:[%s2 + $0x10] sm:$0xff]
        %v571 = vld [vmem:[%s2 + $0x18] sm:$0xff]
        %v572 = vld [vmem:[%s2 + $0x20] sm:$0xff]
        %v573 = vld [vmem:[%s2 + $0x28] sm:$0xff]
        %v574 = vld [vmem:[%s2 + $0x30] sm:$0xff]
        %v575 = vld [vmem:[%s2 + $0x38] sm:$0xff]
        %v576 = vld [vmem:[%s2 + $0x40] sm:$0xff]
        %v577 = vld [vmem:[%s2 + $0x48] sm:$0xff]
        %v578 = vld [vmem:[%s2 + $0x50] sm:$0xff]
        %v579 = vld [vmem:[%s2 + $0x58] sm:$0xff]
        %v580 = vld [vmem:[%s2 + $0x60] sm:$0xff]
        %v581 = vld [vmem:[%s2 + $0x68] sm:$0xff]
        %v582 = vld [vmem:[%s2 + $0x70] sm:$0xff]
        %v583 = vld [vmem:[%s2 + $0x78] sm:$0xff]
        %v584 = vld [vmem:[%s2 + $0x80] sm:$0xff]
        %v585 = vld [vmem:[%s2 + $0x88] sm:$0x3]
        %v587 = vsel %vm422, %v585, 0
        %589 = vmatpush.msra.mxu0 %v583
        %590 = vmatpush.msra.mxu0 %v582
        %591 = vmatpush.msra.mxu0 %v581
        %592 = vmatpush.msra.mxu0 %v580
        %593 = vmatpush.msra.mxu0 %v579
        %594 = vmatpush.msra.mxu0 %v578
        %595 = vmatpush.msra.mxu0 %v577
        %596 = vmatpush.msra.mxu0 %v576
        %597 = vmatpush.msra.mxu0 %v575
        %598 = vmatpush.msra.mxu0 %v574
        %599 = vmatpush.msra.mxu0 %v573
        %600 = vmatpush.msra.mxu0 %v572
        %601 = vmatpush.msra.mxu0 %v571
        %602 = vmatpush.msra.mxu0 %v570
        %603 = vmatpush.msra.mxu0 %v569
        %604 = vmatpush.msra.mxu0 %v568
        %605 = vmatmul.f32.gmra.mxu0 %v313
        %v606 = vpop.f32.mrf.mxu0
        %v607 = vadd.f32 0.0, %v606
        %608 = vmatmul.f32.gmra.mxu0 %v315
        %v609 = vpop.f32.mrf.mxu0
        %v610 = vadd.f32 0.0, %v609
        %611 = vmatmul.f32.gmra.mxu0 %v317
        %v612 = vpop.f32.mrf.mxu0
        %v613 = vadd.f32 0.0, %v612
        %614 = vmatmul.f32.gmra.mxu0 %v319
        %v615 = vpop.f32.mrf.mxu0
        %v616 = vadd.f32 0.0, %v615
        %617 = vmatmul.f32.gmra.mxu0 %v321
        %v618 = vpop.f32.mrf.mxu0
        %v619 = vadd.f32 0.0, %v618
        %620 = vmatmul.f32.gmra.mxu0 %v323
        %v621 = vpop.f32.mrf.mxu0
        %v622 = vadd.f32 0.0, %v621
        %623 = vmatmul.f32.gmra.mxu0 %v325
        %v624 = vpop.f32.mrf.mxu0
        %v625 = vadd.f32 0.0, %v624
        %626 = vmatmul.f32.gmra.mxu0 %v327
        %v627 = vpop.f32.mrf.mxu0
        %v628 = vadd.f32 0.0, %v627
        %629 = vmatmul.f32.gmra.mxu0 %v329
        %v630 = vpop.f32.mrf.mxu0
        %v631 = vadd.f32 0.0, %v630
        %632 = vmatmul.f32.gmra.mxu0 %v331
        %v633 = vpop.f32.mrf.mxu0
        %v634 = vadd.f32 0.0, %v633
        %635 = vmatmul.f32.gmra.mxu0 %v333
        %v636 = vpop.f32.mrf.mxu0
        %v637 = vadd.f32 0.0, %v636
        %638 = vmatmul.f32.gmra.mxu0 %v335
        %v639 = vpop.f32.mrf.mxu0
        %v640 = vadd.f32 0.0, %v639
        %641 = vmatmul.f32.gmra.mxu0 %v337
        %v642 = vpop.f32.mrf.mxu0
        %v643 = vadd.f32 0.0, %v642
        %644 = vmatmul.f32.gmra.mxu0 %v339
        %v645 = vpop.f32.mrf.mxu0
        %v646 = vadd.f32 0.0, %v645
        %647 = vmatmul.f32.gmra.mxu0 %v341
        %v648 = vpop.f32.mrf.mxu0
        %v649 = vadd.f32 0.0, %v648
        %650 = vmatmul.f32.gmra.mxu0 %v343
        %v651 = vpop.f32.mrf.mxu0
        %v652 = vadd.f32 0.0, %v651
        %653 = vmatmul.f32.gmra.mxu0 %v345
        %v654 = vpop.f32.mrf.mxu0
        %v655 = vadd.f32 0.0, %v654
        %656 = vmatmul.f32.gmra.mxu0 %v347
        %v657 = vpop.f32.mrf.mxu0
        %v658 = vadd.f32 0.0, %v657
        %659 = vdwg.mxu0
        %660 = vmatpush.msra.mxu0 0.0
        %661 = vmatpush.msra.mxu0 0.0
        %662 = vmatpush.msra.mxu0 0.0
        %663 = vmatpush.msra.mxu0 0.0
        %664 = vmatpush.msra.mxu0 0.0
        %665 = vmatpush.msra.mxu0 0.0
        %666 = vmatpush.msra.mxu0 0.0
        %667 = vmatpush.msra.mxu0 0.0
        %668 = vmatpush.msra.mxu0 0.0
        %669 = vmatpush.msra.mxu0 0.0
        %670 = vmatpush.msra.mxu0 0.0
        %671 = vmatpush.msra.mxu0 0.0
        %672 = vmatpush.msra.mxu0 0.0
        %673 = vmatpush.msra.mxu0 0.0
        %674 = vmatpush.msra.mxu0 %v587
        %675 = vmatpush.msra.mxu0 %v584
        %676 = vmatmul.f32.gmra.mxu0 %v369
        %v677 = vpop.f32.mrf.mxu0
        %v678 = vadd.f32 %v607, %v677
        %679 = vmatmul.f32.gmra.mxu0 %v372
        %v680 = vpop.f32.mrf.mxu0
        %v681 = vadd.f32 %v610, %v680
        %682 = vmatmul.f32.gmra.mxu0 %v375
        %v683 = vpop.f32.mrf.mxu0
        %v684 = vadd.f32 %v613, %v683
        %685 = vmatmul.f32.gmra.mxu0 %v378
        %v686 = vpop.f32.mrf.mxu0
        %v687 = vadd.f32 %v616, %v686
        %688 = vmatmul.f32.gmra.mxu0 %v381
        %v689 = vpop.f32.mrf.mxu0
        %v690 = vadd.f32 %v619, %v689
        %691 = vmatmul.f32.gmra.mxu0 %v384
        %v692 = vpop.f32.mrf.mxu0
        %v693 = vadd.f32 %v622, %v692
        %694 = vmatmul.f32.gmra.mxu0 %v387
        %v695 = vpop.f32.mrf.mxu0
        %v696 = vadd.f32 %v625, %v695
        %697 = vmatmul.f32.gmra.mxu0 %v390
        %v698 = vpop.f32.mrf.mxu0
        %v699 = vadd.f32 %v628, %v698
        %700 = vmatmul.f32.gmra.mxu0 %v393
        %v701 = vpop.f32.mrf.mxu0
        %v702 = vadd.f32 %v631, %v701
        %703 = vmatmul.f32.gmra.mxu0 %v396
        %v704 = vpop.f32.mrf.mxu0
        %v705 = vadd.f32 %v634, %v704
        %706 = vmatmul.f32.gmra.mxu0 %v399
        %v707 = vpop.f32.mrf.mxu0
        %v708 = vadd.f32 %v637, %v707
        %709 = vmatmul.f32.gmra.mxu0 %v402
        %v710 = vpop.f32.mrf.mxu0
        %v711 = vadd.f32 %v640, %v710
        %712 = vmatmul.f32.gmra.mxu0 %v405
        %v713 = vpop.f32.mrf.mxu0
        %v714 = vadd.f32 %v643, %v713
        %715 = vmatmul.f32.gmra.mxu0 %v408
        %v716 = vpop.f32.mrf.mxu0
        %v717 = vadd.f32 %v646, %v716
        %718 = vmatmul.f32.gmra.mxu0 %v411
        %v719 = vpop.f32.mrf.mxu0
        %v720 = vadd.f32 %v649, %v719
        %721 = vmatmul.f32.gmra.mxu0 %v414
        %v722 = vpop.f32.mrf.mxu0
        %v723 = vadd.f32 %v652, %v722
        %724 = vmatmul.f32.gmra.mxu0 %v417
        %v725 = vpop.f32.mrf.mxu0
        %v726 = vadd.f32 %v655, %v725
        %727 = vmatmul.f32.gmra.mxu0 %v420
        %v728 = vpop.f32.mrf.mxu0
        %v729 = vadd.f32 %v658, %v728
        %730 = vdwg.mxu0
        %v731 = vld [vmem:[%s3] sm:$0xff]
        %v732 = vld [vmem:[%s3 + $0x8] sm:$0xff]
        %v733 = vld [vmem:[%s3 + $0x10] sm:$0xff]
        %v734 = vld [vmem:[%s3 + $0x18] sm:$0xff]
        %v735 = vld [vmem:[%s3 + $0x20] sm:$0xff]
        %v736 = vld [vmem:[%s3 + $0x28] sm:$0xff]
        %v737 = vld [vmem:[%s3 + $0x30] sm:$0xff]
        %v738 = vld [vmem:[%s3 + $0x38] sm:$0xff]
        %v739 = vld [vmem:[%s3 + $0x40] sm:$0xff]
        %v740 = vld [vmem:[%s3 + $0x48] sm:$0xff]
        %v741 = vld [vmem:[%s3 + $0x50] sm:$0xff]
        %v742 = vld [vmem:[%s3 + $0x58] sm:$0xff]
        %v743 = vld [vmem:[%s3 + $0x60] sm:$0xff]
        %v744 = vld [vmem:[%s3 + $0x68] sm:$0xff]
        %v745 = vld [vmem:[%s3 + $0x70] sm:$0xff]
        %v746 = vld [vmem:[%s3 + $0x78] sm:$0xff]
        %v747 = vld [vmem:[%s3 + $0x80] sm:$0xff]
        %v748 = vld [vmem:[%s3 + $0x88] sm:$0x3]
        %v750 = vsel %vm422, %v748, 0
        %752 = vmatpush.msra.mxu0 %v746
        %753 = vmatpush.msra.mxu0 %v745
        %754 = vmatpush.msra.mxu0 %v744
        %755 = vmatpush.msra.mxu0 %v743
        %756 = vmatpush.msra.mxu0 %v742
        %757 = vmatpush.msra.mxu0 %v741
        %758 = vmatpush.msra.mxu0 %v740
        %759 = vmatpush.msra.mxu0 %v739
        %760 = vmatpush.msra.mxu0 %v738
        %761 = vmatpush.msra.mxu0 %v737
        %762 = vmatpush.msra.mxu0 %v736
        %763 = vmatpush.msra.mxu0 %v735
        %764 = vmatpush.msra.mxu0 %v734
        %765 = vmatpush.msra.mxu0 %v733
        %766 = vmatpush.msra.mxu0 %v732
        %767 = vmatpush.msra.mxu0 %v731
        %768 = vmatmul.f32.gmra.mxu0 %v313
        %v769 = vpop.f32.mrf.mxu0
        %v770 = vadd.f32 0.0, %v769
        %771 = vmatmul.f32.gmra.mxu0 %v315
        %v772 = vpop.f32.mrf.mxu0
        %v773 = vadd.f32 0.0, %v772
        %774 = vmatmul.f32.gmra.mxu0 %v317
        %v775 = vpop.f32.mrf.mxu0
        %v776 = vadd.f32 0.0, %v775
        %777 = vmatmul.f32.gmra.mxu0 %v319
        %v778 = vpop.f32.mrf.mxu0
        %v779 = vadd.f32 0.0, %v778
        %780 = vmatmul.f32.gmra.mxu0 %v321
        %v781 = vpop.f32.mrf.mxu0
        %v782 = vadd.f32 0.0, %v781
        %783 = vmatmul.f32.gmra.mxu0 %v323
        %v784 = vpop.f32.mrf.mxu0
        %v785 = vadd.f32 0.0, %v784
        %786 = vmatmul.f32.gmra.mxu0 %v325
        %v787 = vpop.f32.mrf.mxu0
        %v788 = vadd.f32 0.0, %v787
        %789 = vmatmul.f32.gmra.mxu0 %v327
        %v790 = vpop.f32.mrf.mxu0
        %v791 = vadd.f32 0.0, %v790
        %792 = vmatmul.f32.gmra.mxu0 %v329
        %v793 = vpop.f32.mrf.mxu0
        %v794 = vadd.f32 0.0, %v793
        %795 = vmatmul.f32.gmra.mxu0 %v331
        %v796 = vpop.f32.mrf.mxu0
        %v797 = vadd.f32 0.0, %v796
        %798 = vmatmul.f32.gmra.mxu0 %v333
        %v799 = vpop.f32.mrf.mxu0
        %v800 = vadd.f32 0.0, %v799
        %801 = vmatmul.f32.gmra.mxu0 %v335
        %v802 = vpop.f32.mrf.mxu0
        %v803 = vadd.f32 0.0, %v802
        %804 = vmatmul.f32.gmra.mxu0 %v337
        %v805 = vpop.f32.mrf.mxu0
        %v806 = vadd.f32 0.0, %v805
        %807 = vmatmul.f32.gmra.mxu0 %v339
        %v808 = vpop.f32.mrf.mxu0
        %v809 = vadd.f32 0.0, %v808
        %810 = vmatmul.f32.gmra.mxu0 %v341
        %v811 = vpop.f32.mrf.mxu0
        %v812 = vadd.f32 0.0, %v811
        %813 = vmatmul.f32.gmra.mxu0 %v343
        %v814 = vpop.f32.mrf.mxu0
        %v815 = vadd.f32 0.0, %v814
        %816 = vmatmul.f32.gmra.mxu0 %v345
        %v817 = vpop.f32.mrf.mxu0
        %v818 = vadd.f32 0.0, %v817
        %819 = vmatmul.f32.gmra.mxu0 %v347
        %v820 = vpop.f32.mrf.mxu0
        %v821 = vadd.f32 0.0, %v820
        %822 = vdwg.mxu0
        %823 = vmatpush.msra.mxu0 0.0
        %824 = vmatpush.msra.mxu0 0.0
        %825 = vmatpush.msra.mxu0 0.0
        %826 = vmatpush.msra.mxu0 0.0
        %827 = vmatpush.msra.mxu0 0.0
        %828 = vmatpush.msra.mxu0 0.0
        %829 = vmatpush.msra.mxu0 0.0
        %830 = vmatpush.msra.mxu0 0.0
        %831 = vmatpush.msra.mxu0 0.0
        %832 = vmatpush.msra.mxu0 0.0
        %833 = vmatpush.msra.mxu0 0.0
        %834 = vmatpush.msra.mxu0 0.0
        %835 = vmatpush.msra.mxu0 0.0
        %836 = vmatpush.msra.mxu0 0.0
        %837 = vmatpush.msra.mxu0 %v750
        %838 = vmatpush.msra.mxu0 %v747
        %839 = vmatmul.f32.gmra.mxu0 %v369
        %v840 = vpop.f32.mrf.mxu0
        %v841 = vadd.f32 %v770, %v840
        %842 = vmatmul.f32.gmra.mxu0 %v372
        %v843 = vpop.f32.mrf.mxu0
        %v844 = vadd.f32 %v773, %v843
        %845 = vmatmul.f32.gmra.mxu0 %v375
        %v846 = vpop.f32.mrf.mxu0
        %v847 = vadd.f32 %v776, %v846
        %848 = vmatmul.f32.gmra.mxu0 %v378
        %v849 = vpop.f32.mrf.mxu0
        %v850 = vadd.f32 %v779, %v849
        %851 = vmatmul.f32.gmra.mxu0 %v381
        %v852 = vpop.f32.mrf.mxu0
        %v853 = vadd.f32 %v782, %v852
        %854 = vmatmul.f32.gmra.mxu0 %v384
        %v855 = vpop.f32.mrf.mxu0
        %v856 = vadd.f32 %v785, %v855
        %857 = vmatmul.f32.gmra.mxu0 %v387
        %v858 = vpop.f32.mrf.mxu0
        %v859 = vadd.f32 %v788, %v858
        %860 = vmatmul.f32.gmra.mxu0 %v390
        %v861 = vpop.f32.mrf.mxu0
        %v862 = vadd.f32 %v791, %v861
        %863 = vmatmul.f32.gmra.mxu0 %v393
        %v864 = vpop.f32.mrf.mxu0
        %v865 = vadd.f32 %v794, %v864
        %866 = vmatmul.f32.gmra.mxu0 %v396
        %v867 = vpop.f32.mrf.mxu0
        %v868 = vadd.f32 %v797, %v867
        %869 = vmatmul.f32.gmra.mxu0 %v399
        %v870 = vpop.f32.mrf.mxu0
        %v871 = vadd.f32 %v800, %v870
        %872 = vmatmul.f32.gmra.mxu0 %v402
        %v873 = vpop.f32.mrf.mxu0
        %v874 = vadd.f32 %v803, %v873
        %875 = vmatmul.f32.gmra.mxu0 %v405
        %v876 = vpop.f32.mrf.mxu0
        %v877 = vadd.f32 %v806, %v876
        %878 = vmatmul.f32.gmra.mxu0 %v408
        %v879 = vpop.f32.mrf.mxu0
        %v880 = vadd.f32 %v809, %v879
        %881 = vmatmul.f32.gmra.mxu0 %v411
        %v882 = vpop.f32.mrf.mxu0
        %v883 = vadd.f32 %v812, %v882
        %884 = vmatmul.f32.gmra.mxu0 %v414
        %v885 = vpop.f32.mrf.mxu0
        %v886 = vadd.f32 %v815, %v885
        %887 = vmatmul.f32.gmra.mxu0 %v417
        %v888 = vpop.f32.mrf.mxu0
        %v889 = vadd.f32 %v818, %v888
        %890 = vmatmul.f32.gmra.mxu0 %v420
        %v891 = vpop.f32.mrf.mxu0
        %v892 = vadd.f32 %v821, %v891
        %893 = vdwg.mxu0
        %v894 = vld [vmem:[%s4] sm:$0xff]
        %v895 = vld [vmem:[%s4 + $0x8] sm:$0xff]
        %v896 = vld [vmem:[%s4 + $0x10] sm:$0xff]
        %v897 = vld [vmem:[%s4 + $0x18] sm:$0xff]
        %v898 = vld [vmem:[%s4 + $0x20] sm:$0xff]
        %v899 = vld [vmem:[%s4 + $0x28] sm:$0xff]
        %v900 = vld [vmem:[%s4 + $0x30] sm:$0xff]
        %v901 = vld [vmem:[%s4 + $0x38] sm:$0xff]
        %v902 = vld [vmem:[%s4 + $0x40] sm:$0xff]
        %v903 = vld [vmem:[%s4 + $0x48] sm:$0xff]
        %v904 = vld [vmem:[%s4 + $0x50] sm:$0xff]
        %v905 = vld [vmem:[%s4 + $0x58] sm:$0xff]
        %v906 = vld [vmem:[%s4 + $0x60] sm:$0xff]
        %v907 = vld [vmem:[%s4 + $0x68] sm:$0xff]
        %v908 = vld [vmem:[%s4 + $0x70] sm:$0xff]
        %v909 = vld [vmem:[%s4 + $0x78] sm:$0xff]
        %v910 = vld [vmem:[%s4 + $0x80] sm:$0xff]
        %v911 = vld [vmem:[%s4 + $0x88] sm:$0xff]
        %v912 = vld [vmem:[%s4 + $0x90] sm:$0xff]
        %v913 = vld [vmem:[%s4 + $0x98] sm:$0xff]
        %v914 = vld [vmem:[%s4 + $0xa0] sm:$0xff]
        %v915 = vld [vmem:[%s4 + $0xa8] sm:$0xff]
        %v916 = vld [vmem:[%s4 + $0xb0] sm:$0xff]
        %v917 = vld [vmem:[%s4 + $0xb8] sm:$0xff]
        %v918 = vld [vmem:[%s4 + $0xc0] sm:$0xff]
        %v919 = vld [vmem:[%s4 + $0xc8] sm:$0xff]
        %v920 = vld [vmem:[%s4 + $0xd0] sm:$0xff]
        %v921 = vld [vmem:[%s4 + $0xd8] sm:$0xff]
        %v922 = vld [vmem:[%s4 + $0xe0] sm:$0xff]
        %v923 = vld [vmem:[%s4 + $0xe8] sm:$0xff]
        %v924 = vld [vmem:[%s4 + $0xf0] sm:$0xff]
        %v925 = vld [vmem:[%s4 + $0xf8] sm:$0xff]
        %v927 = vsel %vm367, %v895, 0
        %v930 = vsel %vm367, %v897, 0
        %v933 = vsel %vm367, %v899, 0
        %v936 = vsel %vm367, %v901, 0
        %v939 = vsel %vm367, %v903, 0
        %v942 = vsel %vm367, %v905, 0
        %v945 = vsel %vm367, %v907, 0
        %v948 = vsel %vm367, %v909, 0
        %v951 = vsel %vm367, %v911, 0
        %v954 = vsel %vm367, %v913, 0
        %v957 = vsel %vm367, %v915, 0
        %v960 = vsel %vm367, %v917, 0
        %v963 = vsel %vm367, %v919, 0
        %v966 = vsel %vm367, %v921, 0
        %v969 = vsel %vm367, %v923, 0
        %v972 = vsel %vm367, %v925, 0
        %v975 = vsel %vm422, %v566, 0
        %977 = vmatpush.msra.mxu0 %v560
        %978 = vmatpush.msra.mxu0 %v557
        %979 = vmatpush.msra.mxu0 %v554
        %980 = vmatpush.msra.mxu0 %v551
        %981 = vmatpush.msra.mxu0 %v548
        %982 = vmatpush.msra.mxu0 %v545
        %983 = vmatpush.msra.mxu0 %v542
        %984 = vmatpush.msra.mxu0 %v539
        %985 = vmatpush.msra.mxu0 %v536
        %986 = vmatpush.msra.mxu0 %v533
        %987 = vmatpush.msra.mxu0 %v530
        %988 = vmatpush.msra.mxu0 %v527
        %989 = vmatpush.msra.mxu0 %v524
        %990 = vmatpush.msra.mxu0 %v521
        %991 = vmatpush.msra.mxu0 %v518
        %992 = vmatpush.msra.mxu0 %v515
        %993 = vmatmul.f32.gmra.mxu0 %v894
        %v994 = vpop.f32.mrf.mxu0
        %v995 = vadd.f32 0.0, %v994
        %996 = vmatmul.f32.gmra.mxu0 %v896
        %v997 = vpop.f32.mrf.mxu0
        %v998 = vadd.f32 0.0, %v997
        %999 = vmatmul.f32.gmra.mxu0 %v898
        %v1000 = vpop.f32.mrf.mxu0
        %v1001 = vadd.f32 0.0, %v1000
        %1002 = vmatmul.f32.gmra.mxu0 %v900
        %v1003 = vpop.f32.mrf.mxu0
        %v1004 = vadd.f32 0.0, %v1003
        %1005 = vmatmul.f32.gmra.mxu0 %v902
        %v1006 = vpop.f32.mrf.mxu0
        %v1007 = vadd.f32 0.0, %v1006
        %1008 = vmatmul.f32.gmra.mxu0 %v904
        %v1009 = vpop.f32.mrf.mxu0
        %v1010 = vadd.f32 0.0, %v1009
        %1011 = vmatmul.f32.gmra.mxu0 %v906
        %v1012 = vpop.f32.mrf.mxu0
        %v1013 = vadd.f32 0.0, %v1012
        %1014 = vmatmul.f32.gmra.mxu0 %v908
        %v1015 = vpop.f32.mrf.mxu0
        %v1016 = vadd.f32 0.0, %v1015
        %1017 = vmatmul.f32.gmra.mxu0 %v910
        %v1018 = vpop.f32.mrf.mxu0
        %v1019 = vadd.f32 0.0, %v1018
        %1020 = vmatmul.f32.gmra.mxu0 %v912
        %v1021 = vpop.f32.mrf.mxu0
        %v1022 = vadd.f32 0.0, %v1021
        %1023 = vmatmul.f32.gmra.mxu0 %v914
        %v1024 = vpop.f32.mrf.mxu0
        %v1025 = vadd.f32 0.0, %v1024
        %1026 = vmatmul.f32.gmra.mxu0 %v916
        %v1027 = vpop.f32.mrf.mxu0
        %v1028 = vadd.f32 0.0, %v1027
        %1029 = vmatmul.f32.gmra.mxu0 %v918
        %v1030 = vpop.f32.mrf.mxu0
        %v1031 = vadd.f32 0.0, %v1030
        %1032 = vmatmul.f32.gmra.mxu0 %v920
        %v1033 = vpop.f32.mrf.mxu0
        %v1034 = vadd.f32 0.0, %v1033
        %1035 = vmatmul.f32.gmra.mxu0 %v922
        %v1036 = vpop.f32.mrf.mxu0
        %v1037 = vadd.f32 0.0, %v1036
        %1038 = vmatmul.f32.gmra.mxu0 %v924
        %v1039 = vpop.f32.mrf.mxu0
        %v1040 = vadd.f32 0.0, %v1039
        %1041 = vdwg.mxu0
        %1042 = vmatpush.msra.mxu0 0.0
        %1043 = vmatpush.msra.mxu0 0.0
        %1044 = vmatpush.msra.mxu0 0.0
        %1045 = vmatpush.msra.mxu0 0.0
        %1046 = vmatpush.msra.mxu0 0.0
        %1047 = vmatpush.msra.mxu0 0.0
        %1048 = vmatpush.msra.mxu0 0.0
        %1049 = vmatpush.msra.mxu0 0.0
        %1050 = vmatpush.msra.mxu0 0.0
        %1051 = vmatpush.msra.mxu0 0.0
        %1052 = vmatpush.msra.mxu0 0.0
        %1053 = vmatpush.msra.mxu0 0.0
        %1054 = vmatpush.msra.mxu0 0.0
        %1055 = vmatpush.msra.mxu0 0.0
        %1056 = vmatpush.msra.mxu0 %v975
        %1057 = vmatpush.msra.mxu0 %v563
        %1058 = vmatmul.f32.gmra.mxu0 %v927
        %v1059 = vpop.f32.mrf.mxu0
        %v1060 = vadd.f32 %v995, %v1059
        %1061 = vmatmul.f32.gmra.mxu0 %v930
        %v1062 = vpop.f32.mrf.mxu0
        %v1063 = vadd.f32 %v998, %v1062
        %1064 = vmatmul.f32.gmra.mxu0 %v933
        %v1065 = vpop.f32.mrf.mxu0
        %v1066 = vadd.f32 %v1001, %v1065
        %1067 = vmatmul.f32.gmra.mxu0 %v936
        %v1068 = vpop.f32.mrf.mxu0
        %v1069 = vadd.f32 %v1004, %v1068
        %1070 = vmatmul.f32.gmra.mxu0 %v939
        %v1071 = vpop.f32.mrf.mxu0
        %v1072 = vadd.f32 %v1007, %v1071
        %1073 = vmatmul.f32.gmra.mxu0 %v942
        %v1074 = vpop.f32.mrf.mxu0
        %v1075 = vadd.f32 %v1010, %v1074
        %1076 = vmatmul.f32.gmra.mxu0 %v945
        %v1077 = vpop.f32.mrf.mxu0
        %v1078 = vadd.f32 %v1013, %v1077
        %1079 = vmatmul.f32.gmra.mxu0 %v948
        %v1080 = vpop.f32.mrf.mxu0
        %v1081 = vadd.f32 %v1016, %v1080
        %1082 = vmatmul.f32.gmra.mxu0 %v951
        %v1083 = vpop.f32.mrf.mxu0
        %v1084 = vadd.f32 %v1019, %v1083
        %1085 = vmatmul.f32.gmra.mxu0 %v954
        %v1086 = vpop.f32.mrf.mxu0
        %v1087 = vadd.f32 %v1022, %v1086
        %1088 = vmatmul.f32.gmra.mxu0 %v957
        %v1089 = vpop.f32.mrf.mxu0
        %v1090 = vadd.f32 %v1025, %v1089
        %1091 = vmatmul.f32.gmra.mxu0 %v960
        %v1092 = vpop.f32.mrf.mxu0
        %v1093 = vadd.f32 %v1028, %v1092
        %1094 = vmatmul.f32.gmra.mxu0 %v963
        %v1095 = vpop.f32.mrf.mxu0
        %v1096 = vadd.f32 %v1031, %v1095
        %1097 = vmatmul.f32.gmra.mxu0 %v966
        %v1098 = vpop.f32.mrf.mxu0
        %v1099 = vadd.f32 %v1034, %v1098
        %1100 = vmatmul.f32.gmra.mxu0 %v969
        %v1101 = vpop.f32.mrf.mxu0
        %v1102 = vadd.f32 %v1037, %v1101
        %1103 = vmatmul.f32.gmra.mxu0 %v972
        %v1104 = vpop.f32.mrf.mxu0
        %v1105 = vadd.f32 %v1040, %v1104
        %1106 = vdwg.mxu0
        %v1108 = vsel %vm422, %v729, 0
        %1110 = vmatpush.msra.mxu0 %v723
        %1111 = vmatpush.msra.mxu0 %v720
        %1112 = vmatpush.msra.mxu0 %v717
        %1113 = vmatpush.msra.mxu0 %v714
        %1114 = vmatpush.msra.mxu0 %v711
        %1115 = vmatpush.msra.mxu0 %v708
        %1116 = vmatpush.msra.mxu0 %v705
        %1117 = vmatpush.msra.mxu0 %v702
        %1118 = vmatpush.msra.mxu0 %v699
        %1119 = vmatpush.msra.mxu0 %v696
        %1120 = vmatpush.msra.mxu0 %v693
        %1121 = vmatpush.msra.mxu0 %v690
        %1122 = vmatpush.msra.mxu0 %v687
        %1123 = vmatpush.msra.mxu0 %v684
        %1124 = vmatpush.msra.mxu0 %v681
        %1125 = vmatpush.msra.mxu0 %v678
        %1126 = vmatmul.f32.gmra.mxu0 %v894
        %v1127 = vpop.f32.mrf.mxu0
        %v1128 = vadd.f32 0.0, %v1127
        %1129 = vmatmul.f32.gmra.mxu0 %v896
        %v1130 = vpop.f32.mrf.mxu0
        %v1131 = vadd.f32 0.0, %v1130
        %1132 = vmatmul.f32.gmra.mxu0 %v898
        %v1133 = vpop.f32.mrf.mxu0
        %v1134 = vadd.f32 0.0, %v1133
        %1135 = vmatmul.f32.gmra.mxu0 %v900
        %v1136 = vpop.f32.mrf.mxu0
        %v1137 = vadd.f32 0.0, %v1136
        %1138 = vmatmul.f32.gmra.mxu0 %v902
        %v1139 = vpop.f32.mrf.mxu0
        %v1140 = vadd.f32 0.0, %v1139
        %1141 = vmatmul.f32.gmra.mxu0 %v904
        %v1142 = vpop.f32.mrf.mxu0
        %v1143 = vadd.f32 0.0, %v1142
        %1144 = vmatmul.f32.gmra.mxu0 %v906
        %v1145 = vpop.f32.mrf.mxu0
        %v1146 = vadd.f32 0.0, %v1145
        %1147 = vmatmul.f32.gmra.mxu0 %v908
        %v1148 = vpop.f32.mrf.mxu0
        %v1149 = vadd.f32 0.0, %v1148
        %1150 = vmatmul.f32.gmra.mxu0 %v910
        %v1151 = vpop.f32.mrf.mxu0
        %v1152 = vadd.f32 0.0, %v1151
        %1153 = vmatmul.f32.gmra.mxu0 %v912
        %v1154 = vpop.f32.mrf.mxu0
        %v1155 = vadd.f32 0.0, %v1154
        %1156 = vmatmul.f32.gmra.mxu0 %v914
        %v1157 = vpop.f32.mrf.mxu0
        %v1158 = vadd.f32 0.0, %v1157
        %1159 = vmatmul.f32.gmra.mxu0 %v916
        %v1160 = vpop.f32.mrf.mxu0
        %v1161 = vadd.f32 0.0, %v1160
        %1162 = vmatmul.f32.gmra.mxu0 %v918
        %v1163 = vpop.f32.mrf.mxu0
        %v1164 = vadd.f32 0.0, %v1163
        %1165 = vmatmul.f32.gmra.mxu0 %v920
        %v1166 = vpop.f32.mrf.mxu0
        %v1167 = vadd.f32 0.0, %v1166
        %1168 = vmatmul.f32.gmra.mxu0 %v922
        %v1169 = vpop.f32.mrf.mxu0
        %v1170 = vadd.f32 0.0, %v1169
        %1171 = vmatmul.f32.gmra.mxu0 %v924
        %v1172 = vpop.f32.mrf.mxu0
        %v1173 = vadd.f32 0.0, %v1172
        %1174 = vdwg.mxu0
        %1175 = vmatpush.msra.mxu0 0.0
        %1176 = vmatpush.msra.mxu0 0.0
        %1177 = vmatpush.msra.mxu0 0.0
        %1178 = vmatpush.msra.mxu0 0.0
        %1179 = vmatpush.msra.mxu0 0.0
        %1180 = vmatpush.msra.mxu0 0.0
        %1181 = vmatpush.msra.mxu0 0.0
        %1182 = vmatpush.msra.mxu0 0.0
        %1183 = vmatpush.msra.mxu0 0.0
        %1184 = vmatpush.msra.mxu0 0.0
        %1185 = vmatpush.msra.mxu0 0.0
        %1186 = vmatpush.msra.mxu0 0.0
        %1187 = vmatpush.msra.mxu0 0.0
        %1188 = vmatpush.msra.mxu0 0.0
        %1189 = vmatpush.msra.mxu0 %v1108
        %1190 = vmatpush.msra.mxu0 %v726
        %1191 = vmatmul.f32.gmra.mxu0 %v927
        %v1192 = vpop.f32.mrf.mxu0
        %v1193 = vadd.f32 %v1128, %v1192
        %1194 = vmatmul.f32.gmra.mxu0 %v930
        %v1195 = vpop.f32.mrf.mxu0
        %v1196 = vadd.f32 %v1131, %v1195
        %1197 = vmatmul.f32.gmra.mxu0 %v933
        %v1198 = vpop.f32.mrf.mxu0
        %v1199 = vadd.f32 %v1134, %v1198
        %1200 = vmatmul.f32.gmra.mxu0 %v936
        %v1201 = vpop.f32.mrf.mxu0
        %v1202 = vadd.f32 %v1137, %v1201
        %1203 = vmatmul.f32.gmra.mxu0 %v939
        %v1204 = vpop.f32.mrf.mxu0
        %v1205 = vadd.f32 %v1140, %v1204
        %1206 = vmatmul.f32.gmra.mxu0 %v942
        %v1207 = vpop.f32.mrf.mxu0
        %v1208 = vadd.f32 %v1143, %v1207
        %1209 = vmatmul.f32.gmra.mxu0 %v945
        %v1210 = vpop.f32.mrf.mxu0
        %v1211 = vadd.f32 %v1146, %v1210
        %1212 = vmatmul.f32.gmra.mxu0 %v948
        %v1213 = vpop.f32.mrf.mxu0
        %v1214 = vadd.f32 %v1149, %v1213
        %1215 = vmatmul.f32.gmra.mxu0 %v951
        %v1216 = vpop.f32.mrf.mxu0
        %v1217 = vadd.f32 %v1152, %v1216
        %1218 = vmatmul.f32.gmra.mxu0 %v954
        %v1219 = vpop.f32.mrf.mxu0
        %v1220 = vadd.f32 %v1155, %v1219
        %1221 = vmatmul.f32.gmra.mxu0 %v957
        %v1222 = vpop.f32.mrf.mxu0
        %v1223 = vadd.f32 %v1158, %v1222
        %1224 = vmatmul.f32.gmra.mxu0 %v960
        %v1225 = vpop.f32.mrf.mxu0
        %v1226 = vadd.f32 %v1161, %v1225
        %1227 = vmatmul.f32.gmra.mxu0 %v963
        %v1228 = vpop.f32.mrf.mxu0
        %v1229 = vadd.f32 %v1164, %v1228
        %1230 = vmatmul.f32.gmra.mxu0 %v966
        %v1231 = vpop.f32.mrf.mxu0
        %v1232 = vadd.f32 %v1167, %v1231
        %1233 = vmatmul.f32.gmra.mxu0 %v969
        %v1234 = vpop.f32.mrf.mxu0
        %v1235 = vadd.f32 %v1170, %v1234
        %1236 = vmatmul.f32.gmra.mxu0 %v972
        %v1237 = vpop.f32.mrf.mxu0
        %v1238 = vadd.f32 %v1173, %v1237
        %1239 = vdwg.mxu0
        %v1240 = vld [vmem:[%s5] sm:$0xff]
        %v1241 = vld [vmem:[%s5 + $0x8] sm:$0xff]
        %v1242 = vld [vmem:[%s5 + $0x10] sm:$0xff]
        %v1243 = vld [vmem:[%s5 + $0x18] sm:$0xff]
        %v1244 = vld [vmem:[%s5 + $0x20] sm:$0xff]
        %v1245 = vld [vmem:[%s5 + $0x28] sm:$0xff]
        %v1246 = vld [vmem:[%s5 + $0x30] sm:$0xff]
        %v1247 = vld [vmem:[%s5 + $0x38] sm:$0xff]
        %v1248 = vld [vmem:[%s5 + $0x40] sm:$0xff]
        %v1249 = vld [vmem:[%s5 + $0x48] sm:$0xff]
        %v1250 = vld [vmem:[%s5 + $0x50] sm:$0xff]
        %v1251 = vld [vmem:[%s5 + $0x58] sm:$0xff]
        %v1252 = vld [vmem:[%s5 + $0x60] sm:$0xff]
        %v1253 = vld [vmem:[%s5 + $0x68] sm:$0xff]
        %v1254 = vld [vmem:[%s5 + $0x70] sm:$0xff]
        %v1255 = vld [vmem:[%s5 + $0x78] sm:$0xff]
        %v1256 = vld [vmem:[%s5 + $0x80] sm:$0xff]
        %v1257 = vld [vmem:[%s5 + $0x88] sm:$0xff]
        %v1258 = vld [vmem:[%s5 + $0x90] sm:$0xff]
        %v1259 = vld [vmem:[%s5 + $0x98] sm:$0xff]
        %v1260 = vld [vmem:[%s5 + $0xa0] sm:$0xff]
        %v1261 = vld [vmem:[%s5 + $0xa8] sm:$0xff]
        %v1262 = vld [vmem:[%s5 + $0xb0] sm:$0xff]
        %v1263 = vld [vmem:[%s5 + $0xb8] sm:$0xff]
        %v1264 = vld [vmem:[%s5 + $0xc0] sm:$0xff]
        %v1265 = vld [vmem:[%s5 + $0xc8] sm:$0xff]
        %v1266 = vld [vmem:[%s5 + $0xd0] sm:$0xff]
        %v1267 = vld [vmem:[%s5 + $0xd8] sm:$0xff]
        %v1268 = vld [vmem:[%s5 + $0xe0] sm:$0xff]
        %v1269 = vld [vmem:[%s5 + $0xe8] sm:$0xff]
        %v1270 = vld [vmem:[%s5 + $0xf0] sm:$0xff]
        %v1271 = vld [vmem:[%s5 + $0xf8] sm:$0xff]
        %v1273 = vsel %vm367, %v1241, 0
        %v1276 = vsel %vm367, %v1243, 0
        %v1279 = vsel %vm367, %v1245, 0
        %v1282 = vsel %vm367, %v1247, 0
        %v1285 = vsel %vm367, %v1249, 0
        %v1288 = vsel %vm367, %v1251, 0
        %v1291 = vsel %vm367, %v1253, 0
        %v1294 = vsel %vm367, %v1255, 0
        %v1297 = vsel %vm367, %v1257, 0
        %v1300 = vsel %vm367, %v1259, 0
        %v1303 = vsel %vm367, %v1261, 0
        %v1306 = vsel %vm367, %v1263, 0
        %v1309 = vsel %vm367, %v1265, 0
        %v1312 = vsel %vm367, %v1267, 0
        %v1315 = vsel %vm367, %v1269, 0
        %v1318 = vsel %vm367, %v1271, 0
        %v1321 = vsel %vm422, %v892, 0
        %1323 = vmatpush.msra.mxu0 %v886
        %1324 = vmatpush.msra.mxu0 %v883
        %1325 = vmatpush.msra.mxu0 %v880
        %1326 = vmatpush.msra.mxu0 %v877
        %1327 = vmatpush.msra.mxu0 %v874
        %1328 = vmatpush.msra.mxu0 %v871
        %1329 = vmatpush.msra.mxu0 %v868
        %1330 = vmatpush.msra.mxu0 %v865
        %1331 = vmatpush.msra.mxu0 %v862
        %1332 = vmatpush.msra.mxu0 %v859
        %1333 = vmatpush.msra.mxu0 %v856
        %1334 = vmatpush.msra.mxu0 %v853
        %1335 = vmatpush.msra.mxu0 %v850
        %1336 = vmatpush.msra.mxu0 %v847
        %1337 = vmatpush.msra.mxu0 %v844
        %1338 = vmatpush.msra.mxu0 %v841
        %1339 = vmatmul.f32.gmra.mxu0 %v1240
        %v1340 = vpop.f32.mrf.mxu0
        %v1341 = vadd.f32 0.0, %v1340
        %1342 = vmatmul.f32.gmra.mxu0 %v1242
        %v1343 = vpop.f32.mrf.mxu0
        %v1344 = vadd.f32 0.0, %v1343
        %1345 = vmatmul.f32.gmra.mxu0 %v1244
        %v1346 = vpop.f32.mrf.mxu0
        %v1347 = vadd.f32 0.0, %v1346
        %1348 = vmatmul.f32.gmra.mxu0 %v1246
        %v1349 = vpop.f32.mrf.mxu0
        %v1350 = vadd.f32 0.0, %v1349
        %1351 = vmatmul.f32.gmra.mxu0 %v1248
        %v1352 = vpop.f32.mrf.mxu0
        %v1353 = vadd.f32 0.0, %v1352
        %1354 = vmatmul.f32.gmra.mxu0 %v1250
        %v1355 = vpop.f32.mrf.mxu0
        %v1356 = vadd.f32 0.0, %v1355
        %1357 = vmatmul.f32.gmra.mxu0 %v1252
        %v1358 = vpop.f32.mrf.mxu0
        %v1359 = vadd.f32 0.0, %v1358
        %1360 = vmatmul.f32.gmra.mxu0 %v1254
        %v1361 = vpop.f32.mrf.mxu0
        %v1362 = vadd.f32 0.0, %v1361
        %1363 = vmatmul.f32.gmra.mxu0 %v1256
        %v1364 = vpop.f32.mrf.mxu0
        %v1365 = vadd.f32 0.0, %v1364
        %1366 = vmatmul.f32.gmra.mxu0 %v1258
        %v1367 = vpop.f32.mrf.mxu0
        %v1368 = vadd.f32 0.0, %v1367
        %1369 = vmatmul.f32.gmra.mxu0 %v1260
        %v1370 = vpop.f32.mrf.mxu0
        %v1371 = vadd.f32 0.0, %v1370
        %1372 = vmatmul.f32.gmra.mxu0 %v1262
        %v1373 = vpop.f32.mrf.mxu0
        %v1374 = vadd.f32 0.0, %v1373
        %1375 = vmatmul.f32.gmra.mxu0 %v1264
        %v1376 = vpop.f32.mrf.mxu0
        %v1377 = vadd.f32 0.0, %v1376
        %1378 = vmatmul.f32.gmra.mxu0 %v1266
        %v1379 = vpop.f32.mrf.mxu0
        %v1380 = vadd.f32 0.0, %v1379
        %1381 = vmatmul.f32.gmra.mxu0 %v1268
        %v1382 = vpop.f32.mrf.mxu0
        %v1383 = vadd.f32 0.0, %v1382
        %1384 = vmatmul.f32.gmra.mxu0 %v1270
        %v1385 = vpop.f32.mrf.mxu0
        %v1386 = vadd.f32 0.0, %v1385
        %1387 = vdwg.mxu0
        %1388 = vmatpush.msra.mxu0 0.0
        %1389 = vmatpush.msra.mxu0 0.0
        %1390 = vmatpush.msra.mxu0 0.0
        %1391 = vmatpush.msra.mxu0 0.0
        %1392 = vmatpush.msra.mxu0 0.0
        %1393 = vmatpush.msra.mxu0 0.0
        %1394 = vmatpush.msra.mxu0 0.0
        %1395 = vmatpush.msra.mxu0 0.0
        %1396 = vmatpush.msra.mxu0 0.0
        %1397 = vmatpush.msra.mxu0 0.0
        %1398 = vmatpush.msra.mxu0 0.0
        %1399 = vmatpush.msra.mxu0 0.0
        %1400 = vmatpush.msra.mxu0 0.0
        %1401 = vmatpush.msra.mxu0 0.0
        %1402 = vmatpush.msra.mxu0 %v1321
        %1403 = vmatpush.msra.mxu0 %v889
        %1404 = vmatmul.f32.gmra.mxu0 %v1273
        %v1405 = vpop.f32.mrf.mxu0
        %v1406 = vadd.f32 %v1341, %v1405
        %1407 = vmatmul.f32.gmra.mxu0 %v1276
        %v1408 = vpop.f32.mrf.mxu0
        %v1409 = vadd.f32 %v1344, %v1408
        %1410 = vmatmul.f32.gmra.mxu0 %v1279
        %v1411 = vpop.f32.mrf.mxu0
        %v1412 = vadd.f32 %v1347, %v1411
        %1413 = vmatmul.f32.gmra.mxu0 %v1282
        %v1414 = vpop.f32.mrf.mxu0
        %v1415 = vadd.f32 %v1350, %v1414
        %1416 = vmatmul.f32.gmra.mxu0 %v1285
        %v1417 = vpop.f32.mrf.mxu0
        %v1418 = vadd.f32 %v1353, %v1417
        %1419 = vmatmul.f32.gmra.mxu0 %v1288
        %v1420 = vpop.f32.mrf.mxu0
        %v1421 = vadd.f32 %v1356, %v1420
        %1422 = vmatmul.f32.gmra.mxu0 %v1291
        %v1423 = vpop.f32.mrf.mxu0
        %v1424 = vadd.f32 %v1359, %v1423
        %1425 = vmatmul.f32.gmra.mxu0 %v1294
        %v1426 = vpop.f32.mrf.mxu0
        %v1427 = vadd.f32 %v1362, %v1426
        %1428 = vmatmul.f32.gmra.mxu0 %v1297
        %v1429 = vpop.f32.mrf.mxu0
        %v1430 = vadd.f32 %v1365, %v1429
        %1431 = vmatmul.f32.gmra.mxu0 %v1300
        %v1432 = vpop.f32.mrf.mxu0
        %v1433 = vadd.f32 %v1368, %v1432
        %1434 = vmatmul.f32.gmra.mxu0 %v1303
        %v1435 = vpop.f32.mrf.mxu0
        %v1436 = vadd.f32 %v1371, %v1435
        %1437 = vmatmul.f32.gmra.mxu0 %v1306
        %v1438 = vpop.f32.mrf.mxu0
        %v1439 = vadd.f32 %v1374, %v1438
        %1440 = vmatmul.f32.gmra.mxu0 %v1309
        %v1441 = vpop.f32.mrf.mxu0
        %v1442 = vadd.f32 %v1377, %v1441
        %1443 = vmatmul.f32.gmra.mxu0 %v1312
        %v1444 = vpop.f32.mrf.mxu0
        %v1445 = vadd.f32 %v1380, %v1444
        %1446 = vmatmul.f32.gmra.mxu0 %v1315
        %v1447 = vpop.f32.mrf.mxu0
        %v1448 = vadd.f32 %v1383, %v1447
        %1449 = vmatmul.f32.gmra.mxu0 %v1318
        %v1450 = vpop.f32.mrf.mxu0
        %v1451 = vadd.f32 %v1386, %v1450
        %1452 = vdwg.mxu0
        %v1453 = vld [vmem:[%s6] sm:$0xff]
        %v1454 = vld [vmem:[%s6 + $0x8] sm:$0xff]
        %v1455 = vld [vmem:[%s6 + $0x10] sm:$0xff]
        %v1456 = vld [vmem:[%s6 + $0x18] sm:$0xff]
        %v1457 = vld [vmem:[%s6 + $0x20] sm:$0xff]
        %v1458 = vld [vmem:[%s6 + $0x28] sm:$0xff]
        %v1459 = vld [vmem:[%s6 + $0x30] sm:$0xff]
        %v1460 = vld [vmem:[%s6 + $0x38] sm:$0xff]
        %v1461 = vld [vmem:[%s6 + $0x40] sm:$0xff]
        %v1462 = vld [vmem:[%s6 + $0x48] sm:$0xff]
        %v1463 = vld [vmem:[%s6 + $0x50] sm:$0xff]
        %v1464 = vld [vmem:[%s6 + $0x58] sm:$0xff]
        %v1465 = vld [vmem:[%s6 + $0x60] sm:$0xff]
        %v1466 = vld [vmem:[%s6 + $0x68] sm:$0xff]
        %v1467 = vld [vmem:[%s6 + $0x70] sm:$0xff]
        %v1468 = vld [vmem:[%s6 + $0x78] sm:$0xff]
        %v1469 = vld [vmem:[%s6 + $0x80] sm:$0xff]
        %v1470 = vld [vmem:[%s6 + $0x88] sm:$0xff]
        %v1471 = vld [vmem:[%s6 + $0x90] sm:$0xff]
        %v1472 = vld [vmem:[%s6 + $0x98] sm:$0xff]
        %v1473 = vld [vmem:[%s6 + $0xa0] sm:$0xff]
        %v1474 = vld [vmem:[%s6 + $0xa8] sm:$0xff]
        %v1475 = vld [vmem:[%s6 + $0xb0] sm:$0xff]
        %v1476 = vld [vmem:[%s6 + $0xb8] sm:$0xff]
        %v1477 = vld [vmem:[%s6 + $0xc0] sm:$0xff]
        %v1478 = vld [vmem:[%s6 + $0xc8] sm:$0xff]
        %v1479 = vld [vmem:[%s6 + $0xd0] sm:$0xff]
        %v1480 = vld [vmem:[%s6 + $0xd8] sm:$0xff]
        %v1481 = vld [vmem:[%s6 + $0xe0] sm:$0xff]
        %v1482 = vld [vmem:[%s6 + $0xe8] sm:$0xff]
        %v1483 = vld [vmem:[%s6 + $0xf0] sm:$0xff]
        %v1484 = vld [vmem:[%s6 + $0xf8] sm:$0xff]
        %v1486 = vsel %vm367, %v1454, 0
        %v1489 = vsel %vm367, %v1456, 0
        %v1492 = vsel %vm367, %v1458, 0
        %v1495 = vsel %vm367, %v1460, 0
        %v1498 = vsel %vm367, %v1462, 0
        %v1501 = vsel %vm367, %v1464, 0
        %v1504 = vsel %vm367, %v1466, 0
        %v1507 = vsel %vm367, %v1468, 0
        %v1510 = vsel %vm367, %v1470, 0
        %v1513 = vsel %vm367, %v1472, 0
        %v1516 = vsel %vm367, %v1474, 0
        %v1519 = vsel %vm367, %v1476, 0
        %v1522 = vsel %vm367, %v1478, 0
        %v1525 = vsel %vm367, %v1480, 0
        %v1528 = vsel %vm367, %v1482, 0
        %v1531 = vsel %vm367, %v1484, 0
        %1533 = vmatpush.msra.mxu0 %v886
        %1534 = vmatpush.msra.mxu0 %v883
        %1535 = vmatpush.msra.mxu0 %v880
        %1536 = vmatpush.msra.mxu0 %v877
        %1537 = vmatpush.msra.mxu0 %v874
        %1538 = vmatpush.msra.mxu0 %v871
        %1539 = vmatpush.msra.mxu0 %v868
        %1540 = vmatpush.msra.mxu0 %v865
        %1541 = vmatpush.msra.mxu0 %v862
        %1542 = vmatpush.msra.mxu0 %v859
        %1543 = vmatpush.msra.mxu0 %v856
        %1544 = vmatpush.msra.mxu0 %v853
        %1545 = vmatpush.msra.mxu0 %v850
        %1546 = vmatpush.msra.mxu0 %v847
        %1547 = vmatpush.msra.mxu0 %v844
        %1548 = vmatpush.msra.mxu0 %v841
        %1549 = vmatmul.f32.gmra.mxu0 %v1453
        %v1550 = vpop.f32.mrf.mxu0
        %v1551 = vadd.f32 0.0, %v1550
        %1552 = vmatmul.f32.gmra.mxu0 %v1455
        %v1553 = vpop.f32.mrf.mxu0
        %v1554 = vadd.f32 0.0, %v1553
        %1555 = vmatmul.f32.gmra.mxu0 %v1457
        %v1556 = vpop.f32.mrf.mxu0
        %v1557 = vadd.f32 0.0, %v1556
        %1558 = vmatmul.f32.gmra.mxu0 %v1459
        %v1559 = vpop.f32.mrf.mxu0
        %v1560 = vadd.f32 0.0, %v1559
        %1561 = vmatmul.f32.gmra.mxu0 %v1461
        %v1562 = vpop.f32.mrf.mxu0
        %v1563 = vadd.f32 0.0, %v1562
        %1564 = vmatmul.f32.gmra.mxu0 %v1463
        %v1565 = vpop.f32.mrf.mxu0
        %v1566 = vadd.f32 0.0, %v1565
        %1567 = vmatmul.f32.gmra.mxu0 %v1465
        %v1568 = vpop.f32.mrf.mxu0
        %v1569 = vadd.f32 0.0, %v1568
        %1570 = vmatmul.f32.gmra.mxu0 %v1467
        %v1571 = vpop.f32.mrf.mxu0
        %v1572 = vadd.f32 0.0, %v1571
        %1573 = vmatmul.f32.gmra.mxu0 %v1469
        %v1574 = vpop.f32.mrf.mxu0
        %v1575 = vadd.f32 0.0, %v1574
        %1576 = vmatmul.f32.gmra.mxu0 %v1471
        %v1577 = vpop.f32.mrf.mxu0
        %v1578 = vadd.f32 0.0, %v1577
        %1579 = vmatmul.f32.gmra.mxu0 %v1473
        %v1580 = vpop.f32.mrf.mxu0
        %v1581 = vadd.f32 0.0, %v1580
        %1582 = vmatmul.f32.gmra.mxu0 %v1475
        %v1583 = vpop.f32.mrf.mxu0
        %v1584 = vadd.f32 0.0, %v1583
        %1585 = vmatmul.f32.gmra.mxu0 %v1477
        %v1586 = vpop.f32.mrf.mxu0
        %v1587 = vadd.f32 0.0, %v1586
        %1588 = vmatmul.f32.gmra.mxu0 %v1479
        %v1589 = vpop.f32.mrf.mxu0
        %v1590 = vadd.f32 0.0, %v1589
        %1591 = vmatmul.f32.gmra.mxu0 %v1481
        %v1592 = vpop.f32.mrf.mxu0
        %v1593 = vadd.f32 0.0, %v1592
        %1594 = vmatmul.f32.gmra.mxu0 %v1483
        %v1595 = vpop.f32.mrf.mxu0
        %v1596 = vadd.f32 0.0, %v1595
        %1597 = vdwg.mxu0
        %1598 = vmatpush.msra.mxu0 0.0
        %1599 = vmatpush.msra.mxu0 0.0
        %1600 = vmatpush.msra.mxu0 0.0
        %1601 = vmatpush.msra.mxu0 0.0
        %1602 = vmatpush.msra.mxu0 0.0
        %1603 = vmatpush.msra.mxu0 0.0
        %1604 = vmatpush.msra.mxu0 0.0
        %1605 = vmatpush.msra.mxu0 0.0
        %1606 = vmatpush.msra.mxu0 0.0
        %1607 = vmatpush.msra.mxu0 0.0
        %1608 = vmatpush.msra.mxu0 0.0
        %1609 = vmatpush.msra.mxu0 0.0
        %1610 = vmatpush.msra.mxu0 0.0
        %1611 = vmatpush.msra.mxu0 0.0
        %1612 = vmatpush.msra.mxu0 %v1321
        %1613 = vmatpush.msra.mxu0 %v889
        %1614 = vmatmul.f32.gmra.mxu0 %v1486
        %v1615 = vpop.f32.mrf.mxu0
        %v1616 = vadd.f32 %v1551, %v1615
        %1617 = vmatmul.f32.gmra.mxu0 %v1489
        %v1618 = vpop.f32.mrf.mxu0
        %v1619 = vadd.f32 %v1554, %v1618
        %1620 = vmatmul.f32.gmra.mxu0 %v1492
        %v1621 = vpop.f32.mrf.mxu0
        %v1622 = vadd.f32 %v1557, %v1621
        %1623 = vmatmul.f32.gmra.mxu0 %v1495
        %v1624 = vpop.f32.mrf.mxu0
        %v1625 = vadd.f32 %v1560, %v1624
        %1626 = vmatmul.f32.gmra.mxu0 %v1498
        %v1627 = vpop.f32.mrf.mxu0
        %v1628 = vadd.f32 %v1563, %v1627
        %1629 = vmatmul.f32.gmra.mxu0 %v1501
        %v1630 = vpop.f32.mrf.mxu0
        %v1631 = vadd.f32 %v1566, %v1630
        %1632 = vmatmul.f32.gmra.mxu0 %v1504
        %v1633 = vpop.f32.mrf.mxu0
        %v1634 = vadd.f32 %v1569, %v1633
        %1635 = vmatmul.f32.gmra.mxu0 %v1507
        %v1636 = vpop.f32.mrf.mxu0
        %v1637 = vadd.f32 %v1572, %v1636
        %1638 = vmatmul.f32.gmra.mxu0 %v1510
        %v1639 = vpop.f32.mrf.mxu0
        %v1640 = vadd.f32 %v1575, %v1639
        %1641 = vmatmul.f32.gmra.mxu0 %v1513
        %v1642 = vpop.f32.mrf.mxu0
        %v1643 = vadd.f32 %v1578, %v1642
        %1644 = vmatmul.f32.gmra.mxu0 %v1516
        %v1645 = vpop.f32.mrf.mxu0
        %v1646 = vadd.f32 %v1581, %v1645
        %1647 = vmatmul.f32.gmra.mxu0 %v1519
        %v1648 = vpop.f32.mrf.mxu0
        %v1649 = vadd.f32 %v1584, %v1648
        %1650 = vmatmul.f32.gmra.mxu0 %v1522
        %v1651 = vpop.f32.mrf.mxu0
        %v1652 = vadd.f32 %v1587, %v1651
        %1653 = vmatmul.f32.gmra.mxu0 %v1525
        %v1654 = vpop.f32.mrf.mxu0
        %v1655 = vadd.f32 %v1590, %v1654
        %1656 = vmatmul.f32.gmra.mxu0 %v1528
        %v1657 = vpop.f32.mrf.mxu0
        %v1658 = vadd.f32 %v1593, %v1657
        %1659 = vmatmul.f32.gmra.mxu0 %v1531
        %v1660 = vpop.f32.mrf.mxu0
        %v1661 = vadd.f32 %v1596, %v1660
        %1662 = vdwg.mxu0
        %v1663 = vrcp.pop %v1193
        %v1664 = vmul.f32 %v1193, %v1663
        %v1665 = vsub.f32 1.0, %v1664
        %v1666 = vmul.f32 %v1663, %v1665
        %v1667 = vadd.f32 %v1663, %v1666
        %vm1668 = vweird.f32 %v1193
        %vm1669 = vweird.f32 %v1663
        %vm1670 = vmor %vm1668, %vm1669
        %v1671 = vsel %vm1670, %v1663, %v1667
        %v1672 = vand.u32 2147483647, %v1193
        %vm1673 = vcmp.eq.f32.partialorder %v1672, 8.507059e+37
        %v1674 = vand.u32 %v1193, 2147483648
        %v1675 = vor.u32 1.1754944e-38, %v1674
        %v1676 = vsel %vm1673, %v1675, %v1671
        %v1677 = vmul.f32 %v1060, %v1676
        %v1678 = vrcp.pop %v1196
        %v1679 = vmul.f32 %v1196, %v1678
        %v1680 = vsub.f32 1.0, %v1679
        %v1681 = vmul.f32 %v1678, %v1680
        %v1682 = vadd.f32 %v1678, %v1681
        %vm1683 = vweird.f32 %v1196
        %vm1684 = vweird.f32 %v1678
        %vm1685 = vmor %vm1683, %vm1684
        %v1686 = vsel %vm1685, %v1678, %v1682
        %v1687 = vand.u32 2147483647, %v1196
        %vm1688 = vcmp.eq.f32.partialorder %v1687, 8.507059e+37
        %v1689 = vand.u32 %v1196, 2147483648
        %v1690 = vor.u32 1.1754944e-38, %v1689
        %v1691 = vsel %vm1688, %v1690, %v1686
        %v1692 = vmul.f32 %v1063, %v1691
        %v1693 = vrcp.pop %v1199
        %v1694 = vmul.f32 %v1199, %v1693
        %v1695 = vsub.f32 1.0, %v1694
        %v1696 = vmul.f32 %v1693, %v1695
        %v1697 = vadd.f32 %v1693, %v1696
        %vm1698 = vweird.f32 %v1199
        %vm1699 = vweird.f32 %v1693
        %vm1700 = vmor %vm1698, %vm1699
        %v1701 = vsel %vm1700, %v1693, %v1697
        %v1702 = vand.u32 2147483647, %v1199
        %vm1703 = vcmp.eq.f32.partialorder %v1702, 8.507059e+37
        %v1704 = vand.u32 %v1199, 2147483648
        %v1705 = vor.u32 1.1754944e-38, %v1704
        %v1706 = vsel %vm1703, %v1705, %v1701
        %v1707 = vmul.f32 %v1066, %v1706
        %v1708 = vrcp.pop %v1202
        %v1709 = vmul.f32 %v1202, %v1708
        %v1710 = vsub.f32 1.0, %v1709
        %v1711 = vmul.f32 %v1708, %v1710
        %v1712 = vadd.f32 %v1708, %v1711
        %vm1713 = vweird.f32 %v1202
        %vm1714 = vweird.f32 %v1708
        %vm1715 = vmor %vm1713, %vm1714
        %v1716 = vsel %vm1715, %v1708, %v1712
        %v1717 = vand.u32 2147483647, %v1202
        %vm1718 = vcmp.eq.f32.partialorder %v1717, 8.507059e+37
        %v1719 = vand.u32 %v1202, 2147483648
        %v1720 = vor.u32 1.1754944e-38, %v1719
        %v1721 = vsel %vm1718, %v1720, %v1716
        %v1722 = vmul.f32 %v1069, %v1721
        %v1723 = vrcp.pop %v1205
        %v1724 = vmul.f32 %v1205, %v1723
        %v1725 = vsub.f32 1.0, %v1724
        %v1726 = vmul.f32 %v1723, %v1725
        %v1727 = vadd.f32 %v1723, %v1726
        %vm1728 = vweird.f32 %v1205
        %vm1729 = vweird.f32 %v1723
        %vm1730 = vmor %vm1728, %vm1729
        %v1731 = vsel %vm1730, %v1723, %v1727
        %v1732 = vand.u32 2147483647, %v1205
        %vm1733 = vcmp.eq.f32.partialorder %v1732, 8.507059e+37
        %v1734 = vand.u32 %v1205, 2147483648
        %v1735 = vor.u32 1.1754944e-38, %v1734
        %v1736 = vsel %vm1733, %v1735, %v1731
        %v1737 = vmul.f32 %v1072, %v1736
        %v1738 = vrcp.pop %v1208
        %v1739 = vmul.f32 %v1208, %v1738
        %v1740 = vsub.f32 1.0, %v1739
        %v1741 = vmul.f32 %v1738, %v1740
        %v1742 = vadd.f32 %v1738, %v1741
        %vm1743 = vweird.f32 %v1208
        %vm1744 = vweird.f32 %v1738
        %vm1745 = vmor %vm1743, %vm1744
        %v1746 = vsel %vm1745, %v1738, %v1742
        %v1747 = vand.u32 2147483647, %v1208
        %vm1748 = vcmp.eq.f32.partialorder %v1747, 8.507059e+37
        %v1749 = vand.u32 %v1208, 2147483648
        %v1750 = vor.u32 1.1754944e-38, %v1749
        %v1751 = vsel %vm1748, %v1750, %v1746
        %v1752 = vmul.f32 %v1075, %v1751
        %v1753 = vrcp.pop %v1211
        %v1754 = vmul.f32 %v1211, %v1753
        %v1755 = vsub.f32 1.0, %v1754
        %v1756 = vmul.f32 %v1753, %v1755
        %v1757 = vadd.f32 %v1753, %v1756
        %vm1758 = vweird.f32 %v1211
        %vm1759 = vweird.f32 %v1753
        %vm1760 = vmor %vm1758, %vm1759
        %v1761 = vsel %vm1760, %v1753, %v1757
        %v1762 = vand.u32 2147483647, %v1211
        %vm1763 = vcmp.eq.f32.partialorder %v1762, 8.507059e+37
        %v1764 = vand.u32 %v1211, 2147483648
        %v1765 = vor.u32 1.1754944e-38, %v1764
        %v1766 = vsel %vm1763, %v1765, %v1761
        %v1767 = vmul.f32 %v1078, %v1766
        %v1768 = vrcp.pop %v1214
        %v1769 = vmul.f32 %v1214, %v1768
        %v1770 = vsub.f32 1.0, %v1769
        %v1771 = vmul.f32 %v1768, %v1770
        %v1772 = vadd.f32 %v1768, %v1771
        %vm1773 = vweird.f32 %v1214
        %vm1774 = vweird.f32 %v1768
        %vm1775 = vmor %vm1773, %vm1774
        %v1776 = vsel %vm1775, %v1768, %v1772
        %v1777 = vand.u32 2147483647, %v1214
        %vm1778 = vcmp.eq.f32.partialorder %v1777, 8.507059e+37
        %v1779 = vand.u32 %v1214, 2147483648
        %v1780 = vor.u32 1.1754944e-38, %v1779
        %v1781 = vsel %vm1778, %v1780, %v1776
        %v1782 = vmul.f32 %v1081, %v1781
        %v1783 = vrcp.pop %v1217
        %v1784 = vmul.f32 %v1217, %v1783
        %v1785 = vsub.f32 1.0, %v1784
        %v1786 = vmul.f32 %v1783, %v1785
        %v1787 = vadd.f32 %v1783, %v1786
        %vm1788 = vweird.f32 %v1217
        %vm1789 = vweird.f32 %v1783
        %vm1790 = vmor %vm1788, %vm1789
        %v1791 = vsel %vm1790, %v1783, %v1787
        %v1792 = vand.u32 2147483647, %v1217
        %vm1793 = vcmp.eq.f32.partialorder %v1792, 8.507059e+37
        %v1794 = vand.u32 %v1217, 2147483648
        %v1795 = vor.u32 1.1754944e-38, %v1794
        %v1796 = vsel %vm1793, %v1795, %v1791
        %v1797 = vmul.f32 %v1084, %v1796
        %v1798 = vrcp.pop %v1220
        %v1799 = vmul.f32 %v1220, %v1798
        %v1800 = vsub.f32 1.0, %v1799
        %v1801 = vmul.f32 %v1798, %v1800
        %v1802 = vadd.f32 %v1798, %v1801
        %vm1803 = vweird.f32 %v1220
        %vm1804 = vweird.f32 %v1798
        %vm1805 = vmor %vm1803, %vm1804
        %v1806 = vsel %vm1805, %v1798, %v1802
        %v1807 = vand.u32 2147483647, %v1220
        %vm1808 = vcmp.eq.f32.partialorder %v1807, 8.507059e+37
        %v1809 = vand.u32 %v1220, 2147483648
        %v1810 = vor.u32 1.1754944e-38, %v1809
        %v1811 = vsel %vm1808, %v1810, %v1806
        %v1812 = vmul.f32 %v1087, %v1811
        %v1813 = vrcp.pop %v1223
        %v1814 = vmul.f32 %v1223, %v1813
        %v1815 = vsub.f32 1.0, %v1814
        %v1816 = vmul.f32 %v1813, %v1815
        %v1817 = vadd.f32 %v1813, %v1816
        %vm1818 = vweird.f32 %v1223
        %vm1819 = vweird.f32 %v1813
        %vm1820 = vmor %vm1818, %vm1819
        %v1821 = vsel %vm1820, %v1813, %v1817
        %v1822 = vand.u32 2147483647, %v1223
        %vm1823 = vcmp.eq.f32.partialorder %v1822, 8.507059e+37
        %v1824 = vand.u32 %v1223, 2147483648
        %v1825 = vor.u32 1.1754944e-38, %v1824
        %v1826 = vsel %vm1823, %v1825, %v1821
        %v1827 = vmul.f32 %v1090, %v1826
        %v1828 = vrcp.pop %v1226
        %v1829 = vmul.f32 %v1226, %v1828
        %v1830 = vsub.f32 1.0, %v1829
        %v1831 = vmul.f32 %v1828, %v1830
        %v1832 = vadd.f32 %v1828, %v1831
        %vm1833 = vweird.f32 %v1226
        %vm1834 = vweird.f32 %v1828
        %vm1835 = vmor %vm1833, %vm1834
        %v1836 = vsel %vm1835, %v1828, %v1832
        %v1837 = vand.u32 2147483647, %v1226
        %vm1838 = vcmp.eq.f32.partialorder %v1837, 8.507059e+37
        %v1839 = vand.u32 %v1226, 2147483648
        %v1840 = vor.u32 1.1754944e-38, %v1839
        %v1841 = vsel %vm1838, %v1840, %v1836
        %v1842 = vmul.f32 %v1093, %v1841
        %v1843 = vrcp.pop %v1229
        %v1844 = vmul.f32 %v1229, %v1843
        %v1845 = vsub.f32 1.0, %v1844
        %v1846 = vmul.f32 %v1843, %v1845
        %v1847 = vadd.f32 %v1843, %v1846
        %vm1848 = vweird.f32 %v1229
        %vm1849 = vweird.f32 %v1843
        %vm1850 = vmor %vm1848, %vm1849
        %v1851 = vsel %vm1850, %v1843, %v1847
        %v1852 = vand.u32 2147483647, %v1229
        %vm1853 = vcmp.eq.f32.partialorder %v1852, 8.507059e+37
        %v1854 = vand.u32 %v1229, 2147483648
        %v1855 = vor.u32 1.1754944e-38, %v1854
        %v1856 = vsel %vm1853, %v1855, %v1851
        %v1857 = vmul.f32 %v1096, %v1856
        %v1858 = vrcp.pop %v1232
        %v1859 = vmul.f32 %v1232, %v1858
        %v1860 = vsub.f32 1.0, %v1859
        %v1861 = vmul.f32 %v1858, %v1860
        %v1862 = vadd.f32 %v1858, %v1861
        %vm1863 = vweird.f32 %v1232
        %vm1864 = vweird.f32 %v1858
        %vm1865 = vmor %vm1863, %vm1864
        %v1866 = vsel %vm1865, %v1858, %v1862
        %v1867 = vand.u32 2147483647, %v1232
        %vm1868 = vcmp.eq.f32.partialorder %v1867, 8.507059e+37
        %v1869 = vand.u32 %v1232, 2147483648
        %v1870 = vor.u32 1.1754944e-38, %v1869
        %v1871 = vsel %vm1868, %v1870, %v1866
        %v1872 = vmul.f32 %v1099, %v1871
        %v1873 = vrcp.pop %v1235
        %v1874 = vmul.f32 %v1235, %v1873
        %v1875 = vsub.f32 1.0, %v1874
        %v1876 = vmul.f32 %v1873, %v1875
        %v1877 = vadd.f32 %v1873, %v1876
        %vm1878 = vweird.f32 %v1235
        %vm1879 = vweird.f32 %v1873
        %vm1880 = vmor %vm1878, %vm1879
        %v1881 = vsel %vm1880, %v1873, %v1877
        %v1882 = vand.u32 2147483647, %v1235
        %vm1883 = vcmp.eq.f32.partialorder %v1882, 8.507059e+37
        %v1884 = vand.u32 %v1235, 2147483648
        %v1885 = vor.u32 1.1754944e-38, %v1884
        %v1886 = vsel %vm1883, %v1885, %v1881
        %v1887 = vmul.f32 %v1102, %v1886
        %v1888 = vrcp.pop %v1238
        %v1889 = vmul.f32 %v1238, %v1888
        %v1890 = vsub.f32 1.0, %v1889
        %v1891 = vmul.f32 %v1888, %v1890
        %v1892 = vadd.f32 %v1888, %v1891
        %vm1893 = vweird.f32 %v1238
        %vm1894 = vweird.f32 %v1888
        %vm1895 = vmor %vm1893, %vm1894
        %v1896 = vsel %vm1895, %v1888, %v1892
        %v1897 = vand.u32 2147483647, %v1238
        %vm1898 = vcmp.eq.f32.partialorder %v1897, 8.507059e+37
        %v1899 = vand.u32 %v1238, 2147483648
        %v1900 = vor.u32 1.1754944e-38, %v1899
        %v1901 = vsel %vm1898, %v1900, %v1896
        %v1902 = vmul.f32 %v1105, %v1901
        %v1903 = vlog2.pop %v1677
        %v1904 = vmul.f32 %v1903, 0.6931472
        %v1905 = vlog2.pop %v1692
        %v1906 = vmul.f32 %v1905, 0.6931472
        %v1907 = vlog2.pop %v1707
        %v1908 = vmul.f32 %v1907, 0.6931472
        %v1909 = vlog2.pop %v1722
        %v1910 = vmul.f32 %v1909, 0.6931472
        %v1911 = vlog2.pop %v1737
        %v1912 = vmul.f32 %v1911, 0.6931472
        %v1913 = vlog2.pop %v1752
        %v1914 = vmul.f32 %v1913, 0.6931472
        %v1915 = vlog2.pop %v1767
        %v1916 = vmul.f32 %v1915, 0.6931472
        %v1917 = vlog2.pop %v1782
        %v1918 = vmul.f32 %v1917, 0.6931472
        %v1919 = vlog2.pop %v1797
        %v1920 = vmul.f32 %v1919, 0.6931472
        %v1921 = vlog2.pop %v1812
        %v1922 = vmul.f32 %v1921, 0.6931472
        %v1923 = vlog2.pop %v1827
        %v1924 = vmul.f32 %v1923, 0.6931472
        %v1925 = vlog2.pop %v1842
        %v1926 = vmul.f32 %v1925, 0.6931472
        %v1927 = vlog2.pop %v1857
        %v1928 = vmul.f32 %v1927, 0.6931472
        %v1929 = vlog2.pop %v1872
        %v1930 = vmul.f32 %v1929, 0.6931472
        %v1931 = vlog2.pop %v1887
        %v1932 = vmul.f32 %v1931, 0.6931472
        %v1933 = vlog2.pop %v1902
        %v1934 = vmul.f32 %v1933, 0.6931472
        %v1935 = vrcp.pop %v1616
        %v1936 = vmul.f32 %v1616, %v1935
        %v1937 = vsub.f32 1.0, %v1936
        %v1938 = vmul.f32 %v1935, %v1937
        %v1939 = vadd.f32 %v1935, %v1938
        %vm1940 = vweird.f32 %v1616
        %vm1941 = vweird.f32 %v1935
        %vm1942 = vmor %vm1940, %vm1941
        %v1943 = vsel %vm1942, %v1935, %v1939
        %v1944 = vand.u32 2147483647, %v1616
        %vm1945 = vcmp.eq.f32.partialorder %v1944, 8.507059e+37
        %v1946 = vand.u32 %v1616, 2147483648
        %v1947 = vor.u32 1.1754944e-38, %v1946
        %v1948 = vsel %vm1945, %v1947, %v1943
        %v1949 = vmul.f32 %v1406, %v1948
        %v1950 = vrcp.pop %v1619
        %v1951 = vmul.f32 %v1619, %v1950
        %v1952 = vsub.f32 1.0, %v1951
        %v1953 = vmul.f32 %v1950, %v1952
        %v1954 = vadd.f32 %v1950, %v1953
        %vm1955 = vweird.f32 %v1619
        %vm1956 = vweird.f32 %v1950
        %vm1957 = vmor %vm1955, %vm1956
        %v1958 = vsel %vm1957, %v1950, %v1954
        %v1959 = vand.u32 2147483647, %v1619
        %vm1960 = vcmp.eq.f32.partialorder %v1959, 8.507059e+37
        %v1961 = vand.u32 %v1619, 2147483648
        %v1962 = vor.u32 1.1754944e-38, %v1961
        %v1963 = vsel %vm1960, %v1962, %v1958
        %v1964 = vmul.f32 %v1409, %v1963
        %v1965 = vrcp.pop %v1622
        %v1966 = vmul.f32 %v1622, %v1965
        %v1967 = vsub.f32 1.0, %v1966
        %v1968 = vmul.f32 %v1965, %v1967
        %v1969 = vadd.f32 %v1965, %v1968
        %vm1970 = vweird.f32 %v1622
        %vm1971 = vweird.f32 %v1965
        %vm1972 = vmor %vm1970, %vm1971
        %v1973 = vsel %vm1972, %v1965, %v1969
        %v1974 = vand.u32 2147483647, %v1622
        %vm1975 = vcmp.eq.f32.partialorder %v1974, 8.507059e+37
        %v1976 = vand.u32 %v1622, 2147483648
        %v1977 = vor.u32 1.1754944e-38, %v1976
        %v1978 = vsel %vm1975, %v1977, %v1973
        %v1979 = vmul.f32 %v1412, %v1978
        %v1980 = vrcp.pop %v1625
        %v1981 = vmul.f32 %v1625, %v1980
        %v1982 = vsub.f32 1.0, %v1981
        %v1983 = vmul.f32 %v1980, %v1982
        %v1984 = vadd.f32 %v1980, %v1983
        %vm1985 = vweird.f32 %v1625
        %vm1986 = vweird.f32 %v1980
        %vm1987 = vmor %vm1985, %vm1986
        %v1988 = vsel %vm1987, %v1980, %v1984
        %v1989 = vand.u32 2147483647, %v1625
        %vm1990 = vcmp.eq.f32.partialorder %v1989, 8.507059e+37
        %v1991 = vand.u32 %v1625, 2147483648
        %v1992 = vor.u32 1.1754944e-38, %v1991
        %v1993 = vsel %vm1990, %v1992, %v1988
        %v1994 = vmul.f32 %v1415, %v1993
        %v1995 = vrcp.pop %v1628
        %v1996 = vmul.f32 %v1628, %v1995
        %v1997 = vsub.f32 1.0, %v1996
        %v1998 = vmul.f32 %v1995, %v1997
        %v1999 = vadd.f32 %v1995, %v1998
        %vm2000 = vweird.f32 %v1628
        %vm2001 = vweird.f32 %v1995
        %vm2002 = vmor %vm2000, %vm2001
        %v2003 = vsel %vm2002, %v1995, %v1999
        %v2004 = vand.u32 2147483647, %v1628
        %vm2005 = vcmp.eq.f32.partialorder %v2004, 8.507059e+37
        %v2006 = vand.u32 %v1628, 2147483648
        %v2007 = vor.u32 1.1754944e-38, %v2006
        %v2008 = vsel %vm2005, %v2007, %v2003
        %v2009 = vmul.f32 %v1418, %v2008
        %v2010 = vrcp.pop %v1631
        %v2011 = vmul.f32 %v1631, %v2010
        %v2012 = vsub.f32 1.0, %v2011
        %v2013 = vmul.f32 %v2010, %v2012
        %v2014 = vadd.f32 %v2010, %v2013
        %vm2015 = vweird.f32 %v1631
        %vm2016 = vweird.f32 %v2010
        %vm2017 = vmor %vm2015, %vm2016
        %v2018 = vsel %vm2017, %v2010, %v2014
        %v2019 = vand.u32 2147483647, %v1631
        %vm2020 = vcmp.eq.f32.partialorder %v2019, 8.507059e+37
        %v2021 = vand.u32 %v1631, 2147483648
        %v2022 = vor.u32 1.1754944e-38, %v2021
        %v2023 = vsel %vm2020, %v2022, %v2018
        %v2024 = vmul.f32 %v1421, %v2023
        %v2025 = vrcp.pop %v1634
        %v2026 = vmul.f32 %v1634, %v2025
        %v2027 = vsub.f32 1.0, %v2026
        %v2028 = vmul.f32 %v2025, %v2027
        %v2029 = vadd.f32 %v2025, %v2028
        %vm2030 = vweird.f32 %v1634
        %vm2031 = vweird.f32 %v2025
        %vm2032 = vmor %vm2030, %vm2031
        %v2033 = vsel %vm2032, %v2025, %v2029
        %v2034 = vand.u32 2147483647, %v1634
        %vm2035 = vcmp.eq.f32.partialorder %v2034, 8.507059e+37
        %v2036 = vand.u32 %v1634, 2147483648
        %v2037 = vor.u32 1.1754944e-38, %v2036
        %v2038 = vsel %vm2035, %v2037, %v2033
        %v2039 = vmul.f32 %v1424, %v2038
        %v2040 = vrcp.pop %v1637
        %v2041 = vmul.f32 %v1637, %v2040
        %v2042 = vsub.f32 1.0, %v2041
        %v2043 = vmul.f32 %v2040, %v2042
        %v2044 = vadd.f32 %v2040, %v2043
        %vm2045 = vweird.f32 %v1637
        %vm2046 = vweird.f32 %v2040
        %vm2047 = vmor %vm2045, %vm2046
        %v2048 = vsel %vm2047, %v2040, %v2044
        %v2049 = vand.u32 2147483647, %v1637
        %vm2050 = vcmp.eq.f32.partialorder %v2049, 8.507059e+37
        %v2051 = vand.u32 %v1637, 2147483648
        %v2052 = vor.u32 1.1754944e-38, %v2051
        %v2053 = vsel %vm2050, %v2052, %v2048
        %v2054 = vmul.f32 %v1427, %v2053
        %v2055 = vrcp.pop %v1640
        %v2056 = vmul.f32 %v1640, %v2055
        %v2057 = vsub.f32 1.0, %v2056
        %v2058 = vmul.f32 %v2055, %v2057
        %v2059 = vadd.f32 %v2055, %v2058
        %vm2060 = vweird.f32 %v1640
        %vm2061 = vweird.f32 %v2055
        %vm2062 = vmor %vm2060, %vm2061
        %v2063 = vsel %vm2062, %v2055, %v2059
        %v2064 = vand.u32 2147483647, %v1640
        %vm2065 = vcmp.eq.f32.partialorder %v2064, 8.507059e+37
        %v2066 = vand.u32 %v1640, 2147483648
        %v2067 = vor.u32 1.1754944e-38, %v2066
        %v2068 = vsel %vm2065, %v2067, %v2063
        %v2069 = vmul.f32 %v1430, %v2068
        %v2070 = vrcp.pop %v1643
        %v2071 = vmul.f32 %v1643, %v2070
        %v2072 = vsub.f32 1.0, %v2071
        %v2073 = vmul.f32 %v2070, %v2072
        %v2074 = vadd.f32 %v2070, %v2073
        %vm2075 = vweird.f32 %v1643
        %vm2076 = vweird.f32 %v2070
        %vm2077 = vmor %vm2075, %vm2076
        %v2078 = vsel %vm2077, %v2070, %v2074
        %v2079 = vand.u32 2147483647, %v1643
        %vm2080 = vcmp.eq.f32.partialorder %v2079, 8.507059e+37
        %v2081 = vand.u32 %v1643, 2147483648
        %v2082 = vor.u32 1.1754944e-38, %v2081
        %v2083 = vsel %vm2080, %v2082, %v2078
        %v2084 = vmul.f32 %v1433, %v2083
        %v2085 = vrcp.pop %v1646
        %v2086 = vmul.f32 %v1646, %v2085
        %v2087 = vsub.f32 1.0, %v2086
        %v2088 = vmul.f32 %v2085, %v2087
        %v2089 = vadd.f32 %v2085, %v2088
        %vm2090 = vweird.f32 %v1646
        %vm2091 = vweird.f32 %v2085
        %vm2092 = vmor %vm2090, %vm2091
        %v2093 = vsel %vm2092, %v2085, %v2089
        %v2094 = vand.u32 2147483647, %v1646
        %vm2095 = vcmp.eq.f32.partialorder %v2094, 8.507059e+37
        %v2096 = vand.u32 %v1646, 2147483648
        %v2097 = vor.u32 1.1754944e-38, %v2096
        %v2098 = vsel %vm2095, %v2097, %v2093
        %v2099 = vmul.f32 %v1436, %v2098
        %v2100 = vrcp.pop %v1649
        %v2101 = vmul.f32 %v1649, %v2100
        %v2102 = vsub.f32 1.0, %v2101
        %v2103 = vmul.f32 %v2100, %v2102
        %v2104 = vadd.f32 %v2100, %v2103
        %vm2105 = vweird.f32 %v1649
        %vm2106 = vweird.f32 %v2100
        %vm2107 = vmor %vm2105, %vm2106
        %v2108 = vsel %vm2107, %v2100, %v2104
        %v2109 = vand.u32 2147483647, %v1649
        %vm2110 = vcmp.eq.f32.partialorder %v2109, 8.507059e+37
        %v2111 = vand.u32 %v1649, 2147483648
        %v2112 = vor.u32 1.1754944e-38, %v2111
        %v2113 = vsel %vm2110, %v2112, %v2108
        %v2114 = vmul.f32 %v1439, %v2113
        %v2115 = vrcp.pop %v1652
        %v2116 = vmul.f32 %v1652, %v2115
        %v2117 = vsub.f32 1.0, %v2116
        %v2118 = vmul.f32 %v2115, %v2117
        %v2119 = vadd.f32 %v2115, %v2118
        %vm2120 = vweird.f32 %v1652
        %vm2121 = vweird.f32 %v2115
        %vm2122 = vmor %vm2120, %vm2121
        %v2123 = vsel %vm2122, %v2115, %v2119
        %v2124 = vand.u32 2147483647, %v1652
        %vm2125 = vcmp.eq.f32.partialorder %v2124, 8.507059e+37
        %v2126 = vand.u32 %v1652, 2147483648
        %v2127 = vor.u32 1.1754944e-38, %v2126
        %v2128 = vsel %vm2125, %v2127, %v2123
        %v2129 = vmul.f32 %v1442, %v2128
        %v2130 = vrcp.pop %v1655
        %v2131 = vmul.f32 %v1655, %v2130
        %v2132 = vsub.f32 1.0, %v2131
        %v2133 = vmul.f32 %v2130, %v2132
        %v2134 = vadd.f32 %v2130, %v2133
        %vm2135 = vweird.f32 %v1655
        %vm2136 = vweird.f32 %v2130
        %vm2137 = vmor %vm2135, %vm2136
        %v2138 = vsel %vm2137, %v2130, %v2134
        %v2139 = vand.u32 2147483647, %v1655
        %vm2140 = vcmp.eq.f32.partialorder %v2139, 8.507059e+37
        %v2141 = vand.u32 %v1655, 2147483648
        %v2142 = vor.u32 1.1754944e-38, %v2141
        %v2143 = vsel %vm2140, %v2142, %v2138
        %v2144 = vmul.f32 %v1445, %v2143
        %v2145 = vrcp.pop %v1658
        %v2146 = vmul.f32 %v1658, %v2145
        %v2147 = vsub.f32 1.0, %v2146
        %v2148 = vmul.f32 %v2145, %v2147
        %v2149 = vadd.f32 %v2145, %v2148
        %vm2150 = vweird.f32 %v1658
        %vm2151 = vweird.f32 %v2145
        %vm2152 = vmor %vm2150, %vm2151
        %v2153 = vsel %vm2152, %v2145, %v2149
        %v2154 = vand.u32 2147483647, %v1658
        %vm2155 = vcmp.eq.f32.partialorder %v2154, 8.507059e+37
        %v2156 = vand.u32 %v1658, 2147483648
        %v2157 = vor.u32 1.1754944e-38, %v2156
        %v2158 = vsel %vm2155, %v2157, %v2153
        %v2159 = vmul.f32 %v1448, %v2158
        %v2160 = vrcp.pop %v1661
        %v2161 = vmul.f32 %v1661, %v2160
        %v2162 = vsub.f32 1.0, %v2161
        %v2163 = vmul.f32 %v2160, %v2162
        %v2164 = vadd.f32 %v2160, %v2163
        %vm2165 = vweird.f32 %v1661
        %vm2166 = vweird.f32 %v2160
        %vm2167 = vmor %vm2165, %vm2166
        %v2168 = vsel %vm2167, %v2160, %v2164
        %v2169 = vand.u32 2147483647, %v1661
        %vm2170 = vcmp.eq.f32.partialorder %v2169, 8.507059e+37
        %v2171 = vand.u32 %v1661, 2147483648
        %v2172 = vor.u32 1.1754944e-38, %v2171
        %v2173 = vsel %vm2170, %v2172, %v2168
        %v2174 = vmul.f32 %v1451, %v2173
        %v2175 = vlog2.pop %v1949
        %v2176 = vmul.f32 %v2175, 0.6931472
        %v2177 = vlog2.pop %v1964
        %v2178 = vmul.f32 %v2177, 0.6931472
        %v2179 = vlog2.pop %v1979
        %v2180 = vmul.f32 %v2179, 0.6931472
        %v2181 = vlog2.pop %v1994
        %v2182 = vmul.f32 %v2181, 0.6931472
        %v2183 = vlog2.pop %v2009
        %v2184 = vmul.f32 %v2183, 0.6931472
        %v2185 = vlog2.pop %v2024
        %v2186 = vmul.f32 %v2185, 0.6931472
        %v2187 = vlog2.pop %v2039
        %v2188 = vmul.f32 %v2187, 0.6931472
        %v2189 = vlog2.pop %v2054
        %v2190 = vmul.f32 %v2189, 0.6931472
        %v2191 = vlog2.pop %v2069
        %v2192 = vmul.f32 %v2191, 0.6931472
        %v2193 = vlog2.pop %v2084
        %v2194 = vmul.f32 %v2193, 0.6931472
        %v2195 = vlog2.pop %v2099
        %v2196 = vmul.f32 %v2195, 0.6931472
        %v2197 = vlog2.pop %v2114
        %v2198 = vmul.f32 %v2197, 0.6931472
        %v2199 = vlog2.pop %v2129
        %v2200 = vmul.f32 %v2199, 0.6931472
        %v2201 = vlog2.pop %v2144
        %v2202 = vmul.f32 %v2201, 0.6931472
        %v2203 = vlog2.pop %v2159
        %v2204 = vmul.f32 %v2203, 0.6931472
        %v2205 = vlog2.pop %v2174
        %v2206 = vmul.f32 %v2205, 0.6931472
        %v2207 = vmul.f32 %v1904, %v1904
        %v2208 = vmul.f32 %v1906, %v1906
        %v2209 = vmul.f32 %v1908, %v1908
        %v2210 = vmul.f32 %v1910, %v1910
        %v2211 = vmul.f32 %v1912, %v1912
        %v2212 = vmul.f32 %v1914, %v1914
        %v2213 = vmul.f32 %v1916, %v1916
        %v2214 = vmul.f32 %v1918, %v1918
        %v2215 = vmul.f32 %v1920, %v1920
        %v2216 = vmul.f32 %v1922, %v1922
        %v2217 = vmul.f32 %v1924, %v1924
        %v2218 = vmul.f32 %v1926, %v1926
        %v2219 = vmul.f32 %v1928, %v1928
        %v2220 = vmul.f32 %v1930, %v1930
        %v2221 = vmul.f32 %v1932, %v1932
        %v2222 = vmul.f32 %v1934, %v1934
        %v2223 = vmul.f32 %v2176, %v2176
        %v2224 = vmul.f32 %v2178, %v2178
        %v2225 = vmul.f32 %v2180, %v2180
        %v2226 = vmul.f32 %v2182, %v2182
        %v2227 = vmul.f32 %v2184, %v2184
        %v2228 = vmul.f32 %v2186, %v2186
        %v2229 = vmul.f32 %v2188, %v2188
        %v2230 = vmul.f32 %v2190, %v2190
        %v2231 = vmul.f32 %v2192, %v2192
        %v2232 = vmul.f32 %v2194, %v2194
        %v2233 = vmul.f32 %v2196, %v2196
        %v2234 = vmul.f32 %v2198, %v2198
        %v2235 = vmul.f32 %v2200, %v2200
        %v2236 = vmul.f32 %v2202, %v2202
        %v2237 = vmul.f32 %v2204, %v2204
        %v2238 = vmul.f32 %v2206, %v2206
        %v2239 = vadd.f32 %v2207, %v2223
        %v2240 = vadd.f32 %v2208, %v2224
        %v2241 = vadd.f32 %v2209, %v2225
        %v2242 = vadd.f32 %v2210, %v2226
        %v2243 = vadd.f32 %v2211, %v2227
        %v2244 = vadd.f32 %v2212, %v2228
        %v2245 = vadd.f32 %v2213, %v2229
        %v2246 = vadd.f32 %v2214, %v2230
        %v2247 = vadd.f32 %v2215, %v2231
        %v2248 = vadd.f32 %v2216, %v2232
        %v2249 = vadd.f32 %v2217, %v2233
        %v2250 = vadd.f32 %v2218, %v2234
        %v2251 = vadd.f32 %v2219, %v2235
        %v2252 = vadd.f32 %v2220, %v2236
        %v2253 = vadd.f32 %v2221, %v2237
        %v2254 = vadd.f32 %v2222, %v2238
        %v2255 = vrsqrt.pop %v2239
        %v2256 = vmul.f32 %v2255, %v2239
        %v2257 = vmul.f32 %v2256, %v2255
        %v2258 = vmul.f32 0.5, %v2257
        %v2259 = vsub.f32 1.5, %v2258
        %v2260 = vmul.f32 %v2255, %v2259
        %v2261 = vmul.f32 %v2239, %v2260
        %vm2262 = vcmp.eq.f32.partialorder %v2239, inf
        %v2263 = vsel %vm2262, %v2239, %v2261
        %vm2264 = vcmp.eq.f32.partialorder %v2239, 0.0
        %v2265 = vand.u32 %v2239, 2147483648
        %v2266 = vsel %vm2264, %v2265, %v2263
        %v2267 = vrsqrt.pop %v2240
        %v2268 = vmul.f32 %v2267, %v2240
        %v2269 = vmul.f32 %v2268, %v2267
        %v2270 = vmul.f32 0.5, %v2269
        %v2271 = vsub.f32 1.5, %v2270
        %v2272 = vmul.f32 %v2267, %v2271
        %v2273 = vmul.f32 %v2240, %v2272
        %vm2274 = vcmp.eq.f32.partialorder %v2240, inf
        %v2275 = vsel %vm2274, %v2240, %v2273
        %vm2276 = vcmp.eq.f32.partialorder %v2240, 0.0
        %v2277 = vand.u32 %v2240, 2147483648
        %v2278 = vsel %vm2276, %v2277, %v2275
        %v2279 = vrsqrt.pop %v2241
        %v2280 = vmul.f32 %v2279, %v2241
        %v2281 = vmul.f32 %v2280, %v2279
        %v2282 = vmul.f32 0.5, %v2281
        %v2283 = vsub.f32 1.5, %v2282
        %v2284 = vmul.f32 %v2279, %v2283
        %v2285 = vmul.f32 %v2241, %v2284
        %vm2286 = vcmp.eq.f32.partialorder %v2241, inf
        %v2287 = vsel %vm2286, %v2241, %v2285
        %vm2288 = vcmp.eq.f32.partialorder %v2241, 0.0
        %v2289 = vand.u32 %v2241, 2147483648
        %v2290 = vsel %vm2288, %v2289, %v2287
        %v2291 = vrsqrt.pop %v2242
        %v2292 = vmul.f32 %v2291, %v2242
        %v2293 = vmul.f32 %v2292, %v2291
        %v2294 = vmul.f32 0.5, %v2293
        %v2295 = vsub.f32 1.5, %v2294
        %v2296 = vmul.f32 %v2291, %v2295
        %v2297 = vmul.f32 %v2242, %v2296
        %vm2298 = vcmp.eq.f32.partialorder %v2242, inf
        %v2299 = vsel %vm2298, %v2242, %v2297
        %vm2300 = vcmp.eq.f32.partialorder %v2242, 0.0
        %v2301 = vand.u32 %v2242, 2147483648
        %v2302 = vsel %vm2300, %v2301, %v2299
        %v2303 = vrsqrt.pop %v2243
        %v2304 = vmul.f32 %v2303, %v2243
        %v2305 = vmul.f32 %v2304, %v2303
        %v2306 = vmul.f32 0.5, %v2305
        %v2307 = vsub.f32 1.5, %v2306
        %v2308 = vmul.f32 %v2303, %v2307
        %v2309 = vmul.f32 %v2243, %v2308
        %vm2310 = vcmp.eq.f32.partialorder %v2243, inf
        %v2311 = vsel %vm2310, %v2243, %v2309
        %vm2312 = vcmp.eq.f32.partialorder %v2243, 0.0
        %v2313 = vand.u32 %v2243, 2147483648
        %v2314 = vsel %vm2312, %v2313, %v2311
        %v2315 = vrsqrt.pop %v2244
        %v2316 = vmul.f32 %v2315, %v2244
        %v2317 = vmul.f32 %v2316, %v2315
        %v2318 = vmul.f32 0.5, %v2317
        %v2319 = vsub.f32 1.5, %v2318
        %v2320 = vmul.f32 %v2315, %v2319
        %v2321 = vmul.f32 %v2244, %v2320
        %vm2322 = vcmp.eq.f32.partialorder %v2244, inf
        %v2323 = vsel %vm2322, %v2244, %v2321
        %vm2324 = vcmp.eq.f32.partialorder %v2244, 0.0
        %v2325 = vand.u32 %v2244, 2147483648
        %v2326 = vsel %vm2324, %v2325, %v2323
        %v2327 = vrsqrt.pop %v2245
        %v2328 = vmul.f32 %v2327, %v2245
        %v2329 = vmul.f32 %v2328, %v2327
        %v2330 = vmul.f32 0.5, %v2329
        %v2331 = vsub.f32 1.5, %v2330
        %v2332 = vmul.f32 %v2327, %v2331
        %v2333 = vmul.f32 %v2245, %v2332
        %vm2334 = vcmp.eq.f32.partialorder %v2245, inf
        %v2335 = vsel %vm2334, %v2245, %v2333
        %vm2336 = vcmp.eq.f32.partialorder %v2245, 0.0
        %v2337 = vand.u32 %v2245, 2147483648
        %v2338 = vsel %vm2336, %v2337, %v2335
        %v2339 = vrsqrt.pop %v2246
        %v2340 = vmul.f32 %v2339, %v2246
        %v2341 = vmul.f32 %v2340, %v2339
        %v2342 = vmul.f32 0.5, %v2341
        %v2343 = vsub.f32 1.5, %v2342
        %v2344 = vmul.f32 %v2339, %v2343
        %v2345 = vmul.f32 %v2246, %v2344
        %vm2346 = vcmp.eq.f32.partialorder %v2246, inf
        %v2347 = vsel %vm2346, %v2246, %v2345
        %vm2348 = vcmp.eq.f32.partialorder %v2246, 0.0
        %v2349 = vand.u32 %v2246, 2147483648
        %v2350 = vsel %vm2348, %v2349, %v2347
        %v2351 = vrsqrt.pop %v2247
        %v2352 = vmul.f32 %v2351, %v2247
        %v2353 = vmul.f32 %v2352, %v2351
        %v2354 = vmul.f32 0.5, %v2353
        %v2355 = vsub.f32 1.5, %v2354
        %v2356 = vmul.f32 %v2351, %v2355
        %v2357 = vmul.f32 %v2247, %v2356
        %vm2358 = vcmp.eq.f32.partialorder %v2247, inf
        %v2359 = vsel %vm2358, %v2247, %v2357
        %vm2360 = vcmp.eq.f32.partialorder %v2247, 0.0
        %v2361 = vand.u32 %v2247, 2147483648
        %v2362 = vsel %vm2360, %v2361, %v2359
        %v2363 = vrsqrt.pop %v2248
        %v2364 = vmul.f32 %v2363, %v2248
        %v2365 = vmul.f32 %v2364, %v2363
        %v2366 = vmul.f32 0.5, %v2365
        %v2367 = vsub.f32 1.5, %v2366
        %v2368 = vmul.f32 %v2363, %v2367
        %v2369 = vmul.f32 %v2248, %v2368
        %vm2370 = vcmp.eq.f32.partialorder %v2248, inf
        %v2371 = vsel %vm2370, %v2248, %v2369
        %vm2372 = vcmp.eq.f32.partialorder %v2248, 0.0
        %v2373 = vand.u32 %v2248, 2147483648
        %v2374 = vsel %vm2372, %v2373, %v2371
        %v2375 = vrsqrt.pop %v2249
        %v2376 = vmul.f32 %v2375, %v2249
        %v2377 = vmul.f32 %v2376, %v2375
        %v2378 = vmul.f32 0.5, %v2377
        %v2379 = vsub.f32 1.5, %v2378
        %v2380 = vmul.f32 %v2375, %v2379
        %v2381 = vmul.f32 %v2249, %v2380
        %vm2382 = vcmp.eq.f32.partialorder %v2249, inf
        %v2383 = vsel %vm2382, %v2249, %v2381
        %vm2384 = vcmp.eq.f32.partialorder %v2249, 0.0
        %v2385 = vand.u32 %v2249, 2147483648
        %v2386 = vsel %vm2384, %v2385, %v2383
        %v2387 = vrsqrt.pop %v2250
        %v2388 = vmul.f32 %v2387, %v2250
        %v2389 = vmul.f32 %v2388, %v2387
        %v2390 = vmul.f32 0.5, %v2389
        %v2391 = vsub.f32 1.5, %v2390
        %v2392 = vmul.f32 %v2387, %v2391
        %v2393 = vmul.f32 %v2250, %v2392
        %vm2394 = vcmp.eq.f32.partialorder %v2250, inf
        %v2395 = vsel %vm2394, %v2250, %v2393
        %vm2396 = vcmp.eq.f32.partialorder %v2250, 0.0
        %v2397 = vand.u32 %v2250, 2147483648
        %v2398 = vsel %vm2396, %v2397, %v2395
        %v2399 = vrsqrt.pop %v2251
        %v2400 = vmul.f32 %v2399, %v2251
        %v2401 = vmul.f32 %v2400, %v2399
        %v2402 = vmul.f32 0.5, %v2401
        %v2403 = vsub.f32 1.5, %v2402
        %v2404 = vmul.f32 %v2399, %v2403
        %v2405 = vmul.f32 %v2251, %v2404
        %vm2406 = vcmp.eq.f32.partialorder %v2251, inf
        %v2407 = vsel %vm2406, %v2251, %v2405
        %vm2408 = vcmp.eq.f32.partialorder %v2251, 0.0
        %v2409 = vand.u32 %v2251, 2147483648
        %v2410 = vsel %vm2408, %v2409, %v2407
        %v2411 = vrsqrt.pop %v2252
        %v2412 = vmul.f32 %v2411, %v2252
        %v2413 = vmul.f32 %v2412, %v2411
        %v2414 = vmul.f32 0.5, %v2413
        %v2415 = vsub.f32 1.5, %v2414
        %v2416 = vmul.f32 %v2411, %v2415
        %v2417 = vmul.f32 %v2252, %v2416
        %vm2418 = vcmp.eq.f32.partialorder %v2252, inf
        %v2419 = vsel %vm2418, %v2252, %v2417
        %vm2420 = vcmp.eq.f32.partialorder %v2252, 0.0
        %v2421 = vand.u32 %v2252, 2147483648
        %v2422 = vsel %vm2420, %v2421, %v2419
        %v2423 = vrsqrt.pop %v2253
        %v2424 = vmul.f32 %v2423, %v2253
        %v2425 = vmul.f32 %v2424, %v2423
        %v2426 = vmul.f32 0.5, %v2425
        %v2427 = vsub.f32 1.5, %v2426
        %v2428 = vmul.f32 %v2423, %v2427
        %v2429 = vmul.f32 %v2253, %v2428
        %vm2430 = vcmp.eq.f32.partialorder %v2253, inf
        %v2431 = vsel %vm2430, %v2253, %v2429
        %vm2432 = vcmp.eq.f32.partialorder %v2253, 0.0
        %v2433 = vand.u32 %v2253, 2147483648
        %v2434 = vsel %vm2432, %v2433, %v2431
        %v2435 = vrsqrt.pop %v2254
        %v2436 = vmul.f32 %v2435, %v2254
        %v2437 = vmul.f32 %v2436, %v2435
        %v2438 = vmul.f32 0.5, %v2437
        %v2439 = vsub.f32 1.5, %v2438
        %v2440 = vmul.f32 %v2435, %v2439
        %v2441 = vmul.f32 %v2254, %v2440
        %vm2442 = vcmp.eq.f32.partialorder %v2254, inf
        %v2443 = vsel %vm2442, %v2254, %v2441
        %vm2444 = vcmp.eq.f32.partialorder %v2254, 0.0
        %v2445 = vand.u32 %v2254, 2147483648
        %v2446 = vsel %vm2444, %v2445, %v2443
        %2447 = vst [vmem:[%s271] sm:$0xff] %v2266
        %2448 = vst [vmem:[%s271 + $0x8] sm:$0xff] %v2278
        %2449 = vst [vmem:[%s271 + $0x10] sm:$0xff] %v2290
        %2450 = vst [vmem:[%s271 + $0x18] sm:$0xff] %v2302
        %2451 = vst [vmem:[%s271 + $0x20] sm:$0xff] %v2314
        %2452 = vst [vmem:[%s271 + $0x28] sm:$0xff] %v2326
        %2453 = vst [vmem:[%s271 + $0x30] sm:$0xff] %v2338
        %2454 = vst [vmem:[%s271 + $0x38] sm:$0xff] %v2350
        %2455 = vst [vmem:[%s271 + $0x40] sm:$0xff] %v2362
        %2456 = vst [vmem:[%s271 + $0x48] sm:$0xff] %v2374
        %2457 = vst [vmem:[%s271 + $0x50] sm:$0xff] %v2386
        %2458 = vst [vmem:[%s271 + $0x58] sm:$0xff] %v2398
        %2459 = vst [vmem:[%s271 + $0x60] sm:$0xff] %v2410
        %2460 = vst [vmem:[%s271 + $0x68] sm:$0xff] %v2422
        %2461 = vst [vmem:[%s271 + $0x70] sm:$0xff] %v2434
        %2462 = vst [vmem:[%s271 + $0x78] sm:$0xff] %v2446
        %s2463 = sand.u32 %s181, 1
        %s2464 = scalar_lea.sflag [#allocation3], %s2463
        %s2465 = sand.u32 %s181, 1
        %s2466 = smul.addr %s2465, 128
        %s2467 = scalar_lea.vmem [#allocation2], %s2466
        // Predicated region
        $region49: #{gf_forward.1} parent=47 // pred_check
          %p2468 = pneg %p191
        $region50: #{gf_forward.1} parent=47 // pred_check_branch
          %2470 = sbr.rel (%p2468) target = $region52
        $region51: #{gf_forward.1} parent=47 // pred_region
          %2472 = vsyncadd %s2464, 0
          %s2473 = smul.addr %s21, 16
          %s2474 = smul.addr %s2473, 8
          %s2475 = scalar_lea.hbm %s7, %s2474
          %s2476 = sshll.u32 %s2467, 4
          %s2477 = int_to_ptr.vmem [resolvable:$true] %s2476
          %s2478 = sshll.u32 %s2475, 4
          %s2479 = int_to_ptr.hbm [resolvable:$true] %s2478
          %2484 = dma.vmem_to_hbm [thread:$0]  %s2477, 2048, %s2479, %s2464, 128, 128, 8
        $region52: #{gf_forward.1} parent=47 // pred_fallthru
          _
      $region48: #{gf_forward.1} parent=5 // pred_fallthru
        _
      %p2485 = scmp.le.s32.totalorder 2, %s16
      // Predicated region
      $region53: #{gf_forward.1} parent=5 // pred_check
        %p2486 = pneg %p2485
      $region54: #{gf_forward.1} parent=5 // pred_check_branch
        %2488 = sbr.rel (%p2486) target = $region56
      $region55: #{gf_forward.1} parent=5 // pred_region
        %s2489 = ssub.s32 %s16, 2
        // Predicated region
        $region57: #{gf_forward.1} parent=55 // pred_check
          %p2490 = pneg %p197
        $region58: #{gf_forward.1} parent=55 // pred_check_branch
          %2492 = sbr.rel (%p2490) target = $region60
        $region59: #{gf_forward.1} parent=55 // pred_region
          %s2493 = sand.u32 %s182, 1
          %s2494 = scalar_lea.sflag [#allocation3], %s2493
          %s2495 = sand.u32 %s182, 1
          %s2496 = smul.addr %s2495, 128
          %s2497 = scalar_lea.vmem [#allocation2], %s2496
          %2499 = dma.done %s2494, 2048
        $region60: #{gf_forward.1} parent=55 // pred_fallthru
          _
      $region56: #{gf_forward.1} parent=5 // pred_fallthru
        _
    $region6: #{gf_forward.1} parent=1 // loop_footer
      %s20 = sadd.s32 1, %s16
    $region7: #{gf_forward.1} parent=1 // loop_footer_branch
      %15 = sbr.rel target = $region3
    $region8: #{gf_forward.1} parent=1 // loop_exit
      _
    %2500 = vsyncpa [#allocation3], 1
    %s2501 = scalar_lea.sflag [#allocation3], 1
    %2502 = vsyncpa %s2501, 1

</llo_original>
